<compile_context>
chip_gen: v7x
topology: tpu7x:2x2x1
jax: 0.10.0
libtpu: 0.0.40
codegen_flags: <defaults>
</compile_context>

<pallas_src>
import math
from functools import partial

import jax
import jax.numpy as jnp
from jax.experimental import pallas as pl
from jax.experimental.pallas import tpu as pltpu


HIDDEN_OUT = 128      # width of every MLP layer / output embedding
TM_MAX = 1024         # max rows per grid step (sweepable; 512-2048 reasonable)
_SMALL_M = 64         # at/below this many rows a pallas launch is pure overhead


# ---------------------------------------------------------------------------
# Kernel
# ---------------------------------------------------------------------------
def _mlp_kernel(x_ref, w1_ref, w2_ref, w3_ref, w4_ref, b_ref, o_ref):
    """Fused 4-layer MLP on one (TM, D) row tile; everything VMEM-resident.

    Dots run with bf16 operands + f32 accumulation (MXU); bias-add / ReLU
    run in f32 on the VPU (keeps v5e happy: no bf16 VALU there).
    """
    x = x_ref[...].astype(jnp.bfloat16)   # no-op when the producer emits bf16
    h = jnp.dot(x, w1_ref[...], preferred_element_type=jnp.float32)
    h = jnp.maximum(h + b_ref[0:1, :], 0.0)
    h = jnp.dot(h.astype(jnp.bfloat16), w2_ref[...],
                preferred_element_type=jnp.float32)
    h = jnp.maximum(h + b_ref[1:2, :], 0.0)
    h = jnp.dot(h.astype(jnp.bfloat16), w3_ref[...],
                preferred_element_type=jnp.float32)
    h = jnp.maximum(h + b_ref[2:3, :], 0.0)
    h = jnp.dot(h.astype(jnp.bfloat16), w4_ref[...],
                preferred_element_type=jnp.float32)
    h = h + b_ref[3:4, :]
    o_ref[...] = h.astype(o_ref.dtype)    # single downcast (bf16 by default)


# ---------------------------------------------------------------------------
# Tiling / VMEM accounting
# ---------------------------------------------------------------------------
def _round_up(x, m):
    return (x + m - 1) // m * m


def _vmem_bytes_for_tile(tm, d, x_bytes, out_bytes):
    """Estimated VMEM footprint for one grid step (incl. in-kernel temps)."""
    # Double-buffered x / out tiles (auto pipelining).
    io = 2 * tm * d * x_bytes + 2 * tm * HIDDEN_OUT * out_bytes
    # Resident bf16 weights + f32 packed biases (count 2x for buffering).
    wb = 2 * ((d + 3 * HIDDEN_OUT) * HIDDEN_OUT * 2 + 4 * HIDDEN_OUT * 4)
    # In-kernel temporaries: bf16 copy of x, live f32 + bf16 intermediates.
    temps = tm * d * 2 + 3 * tm * HIDDEN_OUT * 4 + 2 * tm * HIDDEN_OUT * 2
    return io + wb + temps


def _vmem_budget_bytes():
    """(tile budget, physical VMEM) — generation aware."""
    cap = 128 * 1024 * 1024
    try:
        info = pltpu.get_tpu_info()
        cap = int(getattr(info, "vmem_capacity_bytes", cap))
    except Exception:                      # no hw info -> assume smallest (v7x)
        cap = 64 * 1024 * 1024
    if cap >= (100 << 20):                 # v5e / v6e: 128 MiB physical
        return 24 << 20, cap
    return 14 << 20, cap                   # v7x: 64 MiB per TC, leave headroom


def _choose_tm(m, d, x_bytes, out_bytes, budget):
    """Largest sublane-aligned row tile whose footprint fits the budget."""
    tm = TM_MAX
    while tm > 8 and _vmem_bytes_for_tile(tm, d, x_bytes, out_bytes) > budget:
        tm //= 2
    tm = max(8, (tm // 8) * 8)
    return min(tm, _round_up(m, 8))


# ---------------------------------------------------------------------------
# Tiny-M fallback (same arithmetic as the kernel, pure jnp)
# ---------------------------------------------------------------------------
def _mlp_jnp(x, w1, w2, w3, w4, b, out_dtype):
    def layer(h, w, bi, relu):
        y = jnp.dot(h.astype(jnp.bfloat16), w,
                    preferred_element_type=jnp.float32) + b[bi:bi + 1, :]
        return jnp.maximum(y, 0.0) if relu else y

    h = layer(x, w1, 0, True)
    h = layer(h, w2, 1, True)
    h = layer(h, w3, 2, True)
    h = layer(h, w4, 3, False)
    return h.astype(out_dtype)


# ---------------------------------------------------------------------------
# Forward
# ---------------------------------------------------------------------------
@partial(jax.jit, static_argnames=("tm", "out_dtype"))
def minigrid_mlp_target_embedding_forward(inputs, params, *, tm=None,
                                          out_dtype=jnp.bfloat16):
    """Forward pass.

    inputs: (T, B, hidden_dim), float32 or bfloat16 (bf16 preferred: halves
            the dominant HBM stream; do NOT pre-cast in a separate pass).
    params: dict with w1..w4 of shape (in_features, out_features) float32
            and "b" of shape (4, 128) float32 (packed biases).
    returns: (state_embedding (T, B, 128) in `out_dtype`, ()).
    """
    T, B, D = inputs.shape
    M = T * B
    x = inputs.reshape(M, D)           # free reshape inside jit; no HBM copy

    # bf16 operands for the MXU; accumulation / epilogue stay f32.
    w1 = params["w1"].astype(jnp.bfloat16)
    w2 = params["w2"].astype(jnp.bfloat16)
    w3 = params["w3"].astype(jnp.bfloat16)
    w4 = params["w4"].astype(jnp.bfloat16)
    b = params["b"].astype(jnp.float32)     # (4, 128)

    # Tiny-M fast path: single small tile -> the pallas launch + weight DMA
    # dominates; plain jnp with identical arithmetic is cheaper.
    if M <= _SMALL_M:
        out = _mlp_jnp(x, w1, w2, w3, w4, b, out_dtype)
        return out.reshape(T, B, HIDDEN_OUT), tuple()

    budget, vmem_cap = _vmem_budget_bytes()
    x_bytes = jnp.dtype(x.dtype).itemsize
    out_bytes = jnp.dtype(out_dtype).itemsize

    if tm is None:
        TM = _choose_tm(M, D, x_bytes, out_bytes, budget)
    else:
        TM = min(max(8, (int(tm) // 8) * 8), _round_up(M, 8))

    grid = (pl.cdiv(M, TM),)

    # Pass a matching scoped-VMEM limit (v5e default is only 16 MiB), kept
    # safely under physical VMEM on every generation (incl. v7x's 64 MiB).
    est = _vmem_bytes_for_tile(TM, D, x_bytes, out_bytes)
    vmem_limit = int(min(max(est + (8 << 20), 32 << 20), vmem_cap - (8 << 20)))

    # Deeper buffering only pays when tiles are small and the grid is long.
    x_spec_kwargs = {}
    if TM < 256 and grid[0] > 2:
        x_spec_kwargs["pipeline_mode"] = pl.Buffered(3)
    x_spec = pl.BlockSpec((TM, D), lambda i: (i, 0), **x_spec_kwargs)

    const = lambda shape: pl.BlockSpec(shape, lambda i: (0, 0))

    weight_bytes = (D * HIDDEN_OUT + 3 * HIDDEN_OUT * HIDDEN_OUT) * 2
    flops = 2 * M * (D * HIDDEN_OUT + 3 * HIDDEN_OUT * HIDDEN_OUT)
    bytes_accessed = (M * D * x_bytes + M * HIDDEN_OUT * out_bytes
                      + weight_bytes + b.size * 4)

    out = pl.pallas_call(
        _mlp_kernel,
        out_shape=jax.ShapeDtypeStruct((M, HIDDEN_OUT), out_dtype),
        grid_spec=pltpu.PrefetchScalarGridSpec(
            num_scalar_prefetch=0,
            grid=grid,
            in_specs=[
                x_spec,                                    # row tile of x
                const(w1.shape), const(w2.shape),          # weights resident
                const(w3.shape), const(w4.shape),
                const(b.shape),                            # packed biases
            ],
            out_specs=pl.BlockSpec((TM, HIDDEN_OUT), lambda i: (i, 0)),
        ),
        # On v7x, switch to pltpu.CORE_PARALLEL if xprof shows one TC idle.
        compiler_params=pltpu.CompilerParams(
            dimension_semantics=("parallel",),
            vmem_limit_bytes=vmem_limit),
        cost_estimate=pl.CostEstimate(
            flops=flops, transcendentals=0, bytes_accessed=bytes_accessed),
    )(x, w1, w2, w3, w4, b)

    state_embedding = out.reshape(T, B, HIDDEN_OUT)
    return state_embedding, tuple()


# ---------------------------------------------------------------------------
# Params / reference
# ---------------------------------------------------------------------------
def init_params(key, hidden_dim):
    """Orthogonal weights (relu gain), zero biases.

    Weights stored as (in_features, out_features) so the kernel computes
    y = x @ W + b, identical to PyTorch's x @ W.T + b with W_torch (out, in).
    Biases are packed into a single (4, 128) array.
    """
    gain = math.sqrt(2.0)  # nn.init.calculate_gain('relu')
    ortho = jax.nn.initializers.orthogonal(scale=gain)
    dims = [(hidden_dim, HIDDEN_OUT)] + [(HIDDEN_OUT, HIDDEN_OUT)] * 3
    keys = jax.random.split(key, len(dims))
    params = {}
    for idx, ((fan_in, fan_out), k) in enumerate(zip(dims, keys), start=1):
        params[f"w{idx}"] = ortho(k, (fan_in, fan_out), jnp.float32)
    params["b"] = jnp.zeros((4, HIDDEN_OUT), jnp.float32)
    return params


def _reference_forward(inputs, params, dot_dtype=jnp.float32):
    """Pure-JAX reference. dot_dtype=bf16 mirrors the kernel's arithmetic."""
    T, B, D = inputs.shape
    x = inputs.reshape(T * B, D).astype(jnp.float32)
    b = params["b"]

    def layer(h, w, bi, relu):
        y = jnp.dot(h.astype(dot_dtype), w.astype(dot_dtype),
                    preferred_element_type=jnp.float32) + b[bi:bi + 1, :]
        return jnp.maximum(y, 0.0) if relu else y

    h = layer(x, params["w1"], 0, True)
    h = layer(h, params["w2"], 1, True)
    h = layer(h, params["w3"], 2, True)
    h = layer(h, params["w4"], 3, False)
    return h.reshape(T, B, HIDDEN_OUT)


# ---------------------------------------------------------------------------
# Self-test
# ---------------------------------------------------------------------------
if __name__ == "__main__":
    key = jax.random.PRNGKey(0)
    k_param, k_in1, k_in2 = jax.random.split(key, 3)

    hidden_dim = 256

    # --- Pallas path: multi-tile grid with a ragged last block -------------
    # M = T*B = 1000 rows; tm=256 -> grid of 4, last tile holds 232 rows.
    T, B = 8, 125
    params = init_params(k_param, hidden_dim)
    inputs = jax.random.normal(k_in1, (T, B, hidden_dim), jnp.float32)

    emb, core_state = minigrid_mlp_target_embedding_forward(inputs, params,
                                                            tm=256)
    emb = jax.block_until_ready(emb)
    assert emb.shape == (T, B, HIDDEN_OUT), emb.shape
    assert emb.dtype == jnp.bfloat16, emb.dtype
    assert core_state == tuple()

    # Tight check vs a reference using the same bf16-operand / f32-accumulate
    # arithmetic as the kernel (loose only for the final bf16 downcast).
    ref_bf16 = _reference_forward(inputs, params, dot_dtype=jnp.bfloat16)
    assert jnp.allclose(emb.astype(jnp.float32), ref_bf16,
                        atol=3e-2, rtol=3e-2), \
        float(jnp.max(jnp.abs(emb.astype(jnp.float32) - ref_bf16)))

    # Loose sanity check vs the full-f32 (PyTorch-equivalent) math.
    ref_f32 = _reference_forward(inputs, params, dot_dtype=jnp.float32)
    assert jnp.allclose(emb.astype(jnp.float32), ref_f32,
                        atol=1.5e-1, rtol=1.5e-1), \
        float(jnp.max(jnp.abs(emb.astype(jnp.float32) - ref_f32)))

    # --- bf16 activations end-to-end (producer already emits bf16) ---------
    emb_bf, _ = minigrid_mlp_target_embedding_forward(
        inputs.astype(jnp.bfloat16), params, tm=256)
    emb_bf = jax.block_until_ready(emb_bf)
    assert emb_bf.dtype == jnp.bfloat16
    assert jnp.allclose(emb_bf.astype(jnp.float32), ref_f32,
                        atol=2e-1, rtol=2e-1)

    # --- tiny-M fast path (pure jnp; pallas launch not worth it) -----------
    T2, B2 = 2, 4
    inputs2 = jax.random.normal(k_in2, (T2, B2, hidden_dim), jnp.float32)
    emb2, cs2 = minigrid_mlp_target_embedding_forward(inputs2, params)
    emb2 = jax.block_until_ready(emb2)
    assert emb2.shape == (T2, B2, HIDDEN_OUT)
    assert cs2 == tuple()
    ref2 = _reference_forward(inputs2, params, dot_dtype=jnp.bfloat16)
    assert jnp.allclose(emb2.astype(jnp.float32), ref2, atol=3e-2, rtol=3e-2)

    print("KERNEL_OK")
</pallas_src>

<mosaic_0001>
module attributes {stable_mosaic.version = 11 : i64} {
  func.func @_mlp_kernel(%arg0: i32, %arg1: memref<256x256xf32, #tpu.memory_space<vmem>>, %arg2: memref<256x128xbf16, #tpu.memory_space<vmem>>, %arg3: memref<128x128xbf16, #tpu.memory_space<vmem>>, %arg4: memref<128x128xbf16, #tpu.memory_space<vmem>>, %arg5: memref<128x128xbf16, #tpu.memory_space<vmem>>, %arg6: memref<4x128xf32, #tpu.memory_space<vmem>>, %arg7: memref<256x128xbf16, #tpu.memory_space<vmem>>) attributes {dimension_semantics = [#tpu.dimension_semantics<parallel>], iteration_bounds = array<i64: 4>, scalar_prefetch = 0 : i64, scratch_operands = 0 : i64, tpu.core_type = #tpu.core_type<tc>, window_params = [{transform_indices = @transform_0, window_bounds = array<i64: 256, 256>}, {pipeline_mode = #tpu.pipeline_mode<synchronous>, transform_indices = @transform_1, window_bounds = array<i64: 256, 128>}, {pipeline_mode = #tpu.pipeline_mode<synchronous>, transform_indices = @transform_2, window_bounds = array<i64: 128, 128>}, {pipeline_mode = #tpu.pipeline_mode<synchronous>, transform_indices = @transform_3, window_bounds = array<i64: 128, 128>}, {pipeline_mode = #tpu.pipeline_mode<synchronous>, transform_indices = @transform_4, window_bounds = array<i64: 128, 128>}, {pipeline_mode = #tpu.pipeline_mode<synchronous>, transform_indices = @transform_5, window_bounds = array<i64: 4, 128>}, {transform_indices = @transform_6, window_bounds = array<i64: 256, 128>}]} {
    %c0 = arith.constant 0 : index
    %c0_0 = arith.constant 0 : index
    %0 = vector.load %arg1[%c0, %c0_0] : memref<256x256xf32, #tpu.memory_space<vmem>>, vector<256x256xf32>
    %1 = arith.truncf %0 : vector<256x256xf32> to vector<256x256xbf16>
    %c0_1 = arith.constant 0 : index
    %c0_2 = arith.constant 0 : index
    %2 = vector.load %arg2[%c0_1, %c0_2] : memref<256x128xbf16, #tpu.memory_space<vmem>>, vector<256x128xbf16>
    %cst = arith.constant dense<0.000000e+00> : vector<256x128xf32>
    %3 = tpu.matmul %1, %2, %cst {dimension_numbers = #tpu.dot_dimension_numbers<[1], [0], [0], [1], [0, 0, 1, 1], [], []>} : vector<256x256xbf16>, vector<256x128xbf16>, vector<256x128xf32> -> vector<256x128xf32>
    %c0_3 = arith.constant 0 : index
    %c0_4 = arith.constant 0 : index
    %4 = vector.load %arg6[%c0_3, %c0_4] : memref<4x128xf32, #tpu.memory_space<vmem>>, vector<1x128xf32>
    %5 = vector.broadcast %4 : vector<1x128xf32> to vector<256x128xf32>
    %6 = arith.addf %3, %5 : vector<256x128xf32>
    %cst_5 = arith.constant 0.000000e+00 : f32
    %7 = vector.broadcast %cst_5 : f32 to vector<256x128xf32>
    %8 = arith.maximumf %6, %7 : vector<256x128xf32>
    %9 = arith.truncf %8 : vector<256x128xf32> to vector<256x128xbf16>
    %c0_6 = arith.constant 0 : index
    %c0_7 = arith.constant 0 : index
    %10 = vector.load %arg3[%c0_6, %c0_7] : memref<128x128xbf16, #tpu.memory_space<vmem>>, vector<128x128xbf16>
    %cst_8 = arith.constant dense<0.000000e+00> : vector<256x128xf32>
    %11 = tpu.matmul %9, %10, %cst_8 {dimension_numbers = #tpu.dot_dimension_numbers<[1], [0], [0], [1], [0, 0, 1, 1], [], []>} : vector<256x128xbf16>, vector<128x128xbf16>, vector<256x128xf32> -> vector<256x128xf32>
    %c1 = arith.constant 1 : index
    %c0_9 = arith.constant 0 : index
    %12 = vector.load %arg6[%c1, %c0_9] : memref<4x128xf32, #tpu.memory_space<vmem>>, vector<1x128xf32>
    %13 = vector.broadcast %12 : vector<1x128xf32> to vector<256x128xf32>
    %14 = arith.addf %11, %13 : vector<256x128xf32>
    %cst_10 = arith.constant 0.000000e+00 : f32
    %15 = vector.broadcast %cst_10 : f32 to vector<256x128xf32>
    %16 = arith.maximumf %14, %15 : vector<256x128xf32>
    %17 = arith.truncf %16 : vector<256x128xf32> to vector<256x128xbf16>
    %c0_11 = arith.constant 0 : index
    %c0_12 = arith.constant 0 : index
    %18 = vector.load %arg4[%c0_11, %c0_12] : memref<128x128xbf16, #tpu.memory_space<vmem>>, vector<128x128xbf16>
    %cst_13 = arith.constant dense<0.000000e+00> : vector<256x128xf32>
    %19 = tpu.matmul %17, %18, %cst_13 {dimension_numbers = #tpu.dot_dimension_numbers<[1], [0], [0], [1], [0, 0, 1, 1], [], []>} : vector<256x128xbf16>, vector<128x128xbf16>, vector<256x128xf32> -> vector<256x128xf32>
    %c2 = arith.constant 2 : index
    %c0_14 = arith.constant 0 : index
    %20 = vector.load %arg6[%c2, %c0_14] : memref<4x128xf32, #tpu.memory_space<vmem>>, vector<1x128xf32>
    %21 = vector.broadcast %20 : vector<1x128xf32> to vector<256x128xf32>
    %22 = arith.addf %19, %21 : vector<256x128xf32>
    %cst_15 = arith.constant 0.000000e+00 : f32
    %23 = vector.broadcast %cst_15 : f32 to vector<256x128xf32>
    %24 = arith.maximumf %22, %23 : vector<256x128xf32>
    %25 = arith.truncf %24 : vector<256x128xf32> to vector<256x128xbf16>
    %c0_16 = arith.constant 0 : index
    %c0_17 = arith.constant 0 : index
    %26 = vector.load %arg5[%c0_16, %c0_17] : memref<128x128xbf16, #tpu.memory_space<vmem>>, vector<128x128xbf16>
    %cst_18 = arith.constant dense<0.000000e+00> : vector<256x128xf32>
    %27 = tpu.matmul %25, %26, %cst_18 {dimension_numbers = #tpu.dot_dimension_numbers<[1], [0], [0], [1], [0, 0, 1, 1], [], []>} : vector<256x128xbf16>, vector<128x128xbf16>, vector<256x128xf32> -> vector<256x128xf32>
    %c3 = arith.constant 3 : index
    %c0_19 = arith.constant 0 : index
    %28 = vector.load %arg6[%c3, %c0_19] : memref<4x128xf32, #tpu.memory_space<vmem>>, vector<1x128xf32>
    %29 = vector.broadcast %28 : vector<1x128xf32> to vector<256x128xf32>
    %30 = arith.addf %27, %29 : vector<256x128xf32>
    %31 = arith.truncf %30 : vector<256x128xf32> to vector<256x128xbf16>
    %c0_20 = arith.constant 0 : index
    %c0_21 = arith.constant 0 : index
    %32 = vector.load %arg7[%c0_20, %c0_21] : memref<256x128xbf16, #tpu.memory_space<vmem>>, vector<256x128xbf16>
    tpu.vector_store %arg7[%c0_20, %c0_21], %31 {strides = array<i32>} : memref<256x128xbf16, #tpu.memory_space<vmem>>, vector<256x128xbf16>,
    return
  }
  func.func @transform_0(%arg0: i32) -> (i32, i32) {
    %c0_i32 = arith.constant 0 : i32
    %c0_i32_0 = arith.constant 0 : i32
    return %arg0, %c0_i32 : i32, i32
  }
  func.func @transform_1(%arg0: i32) -> (i32, i32) {
    %c0_i32 = arith.constant 0 : i32
    %c0_i32_0 = arith.constant 0 : i32
    %c0_i32_1 = arith.constant 0 : i32
    return %c0_i32, %c0_i32_0 : i32, i32
  }
  func.func @transform_2(%arg0: i32) -> (i32, i32) {
    %c0_i32 = arith.constant 0 : i32
    %c0_i32_0 = arith.constant 0 : i32
    %c0_i32_1 = arith.constant 0 : i32
    return %c0_i32, %c0_i32_0 : i32, i32
  }
  func.func @transform_3(%arg0: i32) -> (i32, i32) {
    %c0_i32 = arith.constant 0 : i32
    %c0_i32_0 = arith.constant 0 : i32
    %c0_i32_1 = arith.constant 0 : i32
    return %c0_i32, %c0_i32_0 : i32, i32
  }
  func.func @transform_4(%arg0: i32) -> (i32, i32) {
    %c0_i32 = arith.constant 0 : i32
    %c0_i32_0 = arith.constant 0 : i32
    %c0_i32_1 = arith.constant 0 : i32
    return %c0_i32, %c0_i32_0 : i32, i32
  }
  func.func @transform_5(%arg0: i32) -> (i32, i32) {
    %c0_i32 = arith.constant 0 : i32
    %c0_i32_0 = arith.constant 0 : i32
    %c0_i32_1 = arith.constant 0 : i32
    return %c0_i32, %c0_i32_0 : i32, i32
  }
  func.func @transform_6(%arg0: i32) -> (i32, i32) {
    %c0_i32 = arith.constant 0 : i32
    %c0_i32_0 = arith.constant 0 : i32
    return %arg0, %c0_i32 : i32, i32
  }
}

</mosaic_0001>

<llo_original>
// kernel: minigrid_mlp_target_embedding_forward.1
$region0: #{minigrid_mlp_target_embedding_forward.1}
  #allocation0 [shape = 'u32[]', space=smem, size = 0x4, offset = 0x4, fixed_abs, tag = 'smem constant byte address 0x4 - core index']
  #allocation1 [shape = 'u32[144,128]{1,0:T(1,128)}', space=vmem, size = 0x12000, scoped, tag = 'internal scratch']
  %s0 = inlined_call_operand.vmem [shape: f32[1000,256], index: 0, kind: input, shape index: {}]
  %s1 = inlined_call_operand.vmem [shape: bf16[256,128], index: 1, kind: input, shape index: {}]
  %s2 = inlined_call_operand.vmem [shape: bf16[128,128], index: 2, kind: input, shape index: {}]
  %s3 = inlined_call_operand.vmem [shape: bf16[128,128], index: 3, kind: input, shape index: {}]
  %s4 = inlined_call_operand.vmem [shape: bf16[128,128], index: 4, kind: input, shape index: {}]
  %s5 = inlined_call_operand.vmem [shape: f32[4,128], index: 5, kind: input, shape index: {}]
  %s6 = inlined_call_operand.vmem [shape: bf16[1000,128], index: 6, kind: output, shape index: {}]
  %s7 = sld [smem:[#allocation0]]
  $region101: #{minigrid_mlp_target_embedding_forward.1} parent=0
    _
  %s9 = ssub.s32 1, %s7
  %s10 = scalar_select 0, %s9, %s7
  $region1: #{minigrid_mlp_target_embedding_forward.1} parent=0
    #allocation2 [shape = 'u8[131072]{0}', space=vmem, size = 0x20000, scoped, tag = 'output window, operand 0']
    loop: start=0, step=1, limit=6
    $region2: #{minigrid_mlp_target_embedding_forward.1} parent=1 // loop_pre_header
      _
    $region3: #{minigrid_mlp_target_embedding_forward.1} parent=1 // loop_header
      %s12 = sphi 0, %s16
      %p13 = scmp.ge.s32.totalorder %s12, 6
      %s22 = sphi 0, %s24
      %s25 = sphi 0, %s22
      %s26 = sphi 0, %s25
      %s42 = sphi 0, %s26
      %s46 = sphi 0, %s46
      %s48 = sphi 0, %s46
      %s49 = sphi 0, %s48
      %s63 = sphi 0, %s49
      %s67 = sphi 0, %s67
      %s69 = sphi 0, %s67
      %s70 = sphi 0, %s69
      %s84 = sphi 0, %s70
      %s88 = sphi 0, %s88
      %s90 = sphi 0, %s88
      %s91 = sphi 0, %s90
      %s105 = sphi 0, %s91
      %s109 = sphi 0, %s109
      %s111 = sphi 0, %s109
      %s112 = sphi 0, %s111
      %s126 = sphi 0, %s112
      %s130 = sphi 0, %s130
      %s132 = sphi 0, %s130
      %s133 = sphi 0, %s132
      %s147 = sphi 0, %s133
      %s153 = sphi 0, %s155
      %s156 = sphi 0, %s153
      %s157 = sphi 0, %s156
      %s173 = sphi 0, %s157
    $region4: #{minigrid_mlp_target_embedding_forward.1} parent=1 // loop_header_branch
      %15 = sbr.rel (%p13) target = $region8
    $region5: #{minigrid_mlp_target_embedding_forward.1} parent=1 // loop_body
      %s17 = ssub.s32 %s12, 1
      %s18 = ssub.s32 %s12, 2
      %s19 = sadd.s32 %s12, 1
      %s20 = ssub.s32 %s12, %s19
      %p21 = scmp.eq.s32.totalorder %s20, 0
      %s23 = sadd.s32 %s22, 1
      %s24 = scalar_select %p21, %s22, %s23
      %p27 = pneg %p21
      %p28 = scmp.eq.s32.totalorder %s12, 3
      %p29 = por %p27, %p28
      %p30 = scmp.ne.s32.totalorder %s22, %s25
      %p31 = scmp.eq.s32.totalorder %s12, 0
      %p32 = por %p30, %p31
      %p33 = scmp.ne.s32.totalorder %s22, %s25
      %p34 = scmp.eq.s32.totalorder %s17, 3
      %p35 = por %p33, %p34
      %p36 = scmp.ne.s32.totalorder %s25, %s26
      %p37 = scmp.eq.s32.totalorder %s17, 0
      %p38 = por %p36, %p37
      %p39 = scmp.ne.s32.totalorder %s25, %s26
      %p40 = scmp.eq.s32.totalorder %s18, 3
      %p41 = por %p39, %p40
      %p43 = scmp.ne.s32.totalorder %s26, %s42
      %p44 = scmp.eq.s32.totalorder %s18, 0
      %p45 = por %p43, %p44
      %s47 = sadd.s32 %s46, 1
      %p50 = scmp.eq.s32.totalorder %s12, 3
      %p51 = scmp.ne.s32.totalorder %s46, %s48
      %p52 = scmp.eq.s32.totalorder %s12, 0
      %p53 = por %p51, %p52
      %p54 = scmp.ne.s32.totalorder %s46, %s48
      %p55 = scmp.eq.s32.totalorder %s17, 3
      %p56 = por %p54, %p55
      %p57 = scmp.ne.s32.totalorder %s48, %s49
      %p58 = scmp.eq.s32.totalorder %s17, 0
      %p59 = por %p57, %p58
      %p60 = scmp.ne.s32.totalorder %s48, %s49
      %p61 = scmp.eq.s32.totalorder %s18, 3
      %p62 = por %p60, %p61
      %p64 = scmp.ne.s32.totalorder %s49, %s63
      %p65 = scmp.eq.s32.totalorder %s18, 0
      %p66 = por %p64, %p65
      %s68 = sadd.s32 %s67, 1
      %p71 = scmp.eq.s32.totalorder %s12, 3
      %p72 = scmp.ne.s32.totalorder %s67, %s69
      %p73 = scmp.eq.s32.totalorder %s12, 0
      %p74 = por %p72, %p73
      %p75 = scmp.ne.s32.totalorder %s67, %s69
      %p76 = scmp.eq.s32.totalorder %s17, 3
      %p77 = por %p75, %p76
      %p78 = scmp.ne.s32.totalorder %s69, %s70
      %p79 = scmp.eq.s32.totalorder %s17, 0
      %p80 = por %p78, %p79
      %p81 = scmp.ne.s32.totalorder %s69, %s70
      %p82 = scmp.eq.s32.totalorder %s18, 3
      %p83 = por %p81, %p82
      %p85 = scmp.ne.s32.totalorder %s70, %s84
      %p86 = scmp.eq.s32.totalorder %s18, 0
      %p87 = por %p85, %p86
      %s89 = sadd.s32 %s88, 1
      %p92 = scmp.eq.s32.totalorder %s12, 3
      %p93 = scmp.ne.s32.totalorder %s88, %s90
      %p94 = scmp.eq.s32.totalorder %s12, 0
      %p95 = por %p93, %p94
      %p96 = scmp.ne.s32.totalorder %s88, %s90
      %p97 = scmp.eq.s32.totalorder %s17, 3
      %p98 = por %p96, %p97
      %p99 = scmp.ne.s32.totalorder %s90, %s91
      %p100 = scmp.eq.s32.totalorder %s17, 0
      %p101 = por %p99, %p100
      %p102 = scmp.ne.s32.totalorder %s90, %s91
      %p103 = scmp.eq.s32.totalorder %s18, 3
      %p104 = por %p102, %p103
      %p106 = scmp.ne.s32.totalorder %s91, %s105
      %p107 = scmp.eq.s32.totalorder %s18, 0
      %p108 = por %p106, %p107
      %s110 = sadd.s32 %s109, 1
      %p113 = scmp.eq.s32.totalorder %s12, 3
      %p114 = scmp.ne.s32.totalorder %s109, %s111
      %p115 = scmp.eq.s32.totalorder %s12, 0
      %p116 = por %p114, %p115
      %p117 = scmp.ne.s32.totalorder %s109, %s111
      %p118 = scmp.eq.s32.totalorder %s17, 3
      %p119 = por %p117, %p118
      %p120 = scmp.ne.s32.totalorder %s111, %s112
      %p121 = scmp.eq.s32.totalorder %s17, 0
      %p122 = por %p120, %p121
      %p123 = scmp.ne.s32.totalorder %s111, %s112
      %p124 = scmp.eq.s32.totalorder %s18, 3
      %p125 = por %p123, %p124
      %p127 = scmp.ne.s32.totalorder %s112, %s126
      %p128 = scmp.eq.s32.totalorder %s18, 0
      %p129 = por %p127, %p128
      %s131 = sadd.s32 %s130, 1
      %p134 = scmp.eq.s32.totalorder %s12, 3
      %p135 = scmp.ne.s32.totalorder %s130, %s132
      %p136 = scmp.eq.s32.totalorder %s12, 0
      %p137 = por %p135, %p136
      %p138 = scmp.ne.s32.totalorder %s130, %s132
      %p139 = scmp.eq.s32.totalorder %s17, 3
      %p140 = por %p138, %p139
      %p141 = scmp.ne.s32.totalorder %s132, %s133
      %p142 = scmp.eq.s32.totalorder %s17, 0
      %p143 = por %p141, %p142
      %p144 = scmp.ne.s32.totalorder %s132, %s133
      %p145 = scmp.eq.s32.totalorder %s18, 3
      %p146 = por %p144, %p145
      %p148 = scmp.ne.s32.totalorder %s133, %s147
      %p149 = scmp.eq.s32.totalorder %s18, 0
      %p150 = por %p148, %p149
      %s151 = ssub.s32 %s12, %s19
      %p152 = scmp.eq.s32.totalorder %s151, 0
      %s154 = sadd.s32 %s153, 1
      %s155 = scalar_select %p152, %s153, %s154
      %p158 = pneg %p152
      %p159 = scmp.eq.s32.totalorder %s12, 3
      %p160 = por %p158, %p159
      %p161 = scmp.ne.s32.totalorder %s153, %s156
      %p162 = scmp.eq.s32.totalorder %s12, 0
      %p163 = por %p161, %p162
      %p164 = scmp.ne.s32.totalorder %s153, %s156
      %p165 = scmp.eq.s32.totalorder %s17, 3
      %p166 = por %p164, %p165
      %p167 = scmp.ne.s32.totalorder %s156, %s157
      %p168 = scmp.eq.s32.totalorder %s17, 0
      %p169 = por %p167, %p168
      %p170 = scmp.ne.s32.totalorder %s156, %s157
      %p171 = scmp.eq.s32.totalorder %s18, 3
      %p172 = por %p170, %p171
      %p174 = scmp.ne.s32.totalorder %s157, %s173
      %p175 = scmp.eq.s32.totalorder %s18, 0
      %p176 = por %p174, %p175
      %p177 = scmp.le.s32.totalorder 1, %s12
      %p178 = scmp.lt.s32.totalorder %s12, 5
      %p179 = pnand %p177, %p178
      %p180 = pneg %p179
      // Predicated region
      $region9: #{minigrid_mlp_target_embedding_forward.1} parent=5 // pred_check
        _
      $region10: #{minigrid_mlp_target_embedding_forward.1} parent=5 // pred_check_branch
        %182 = sbr.rel (%p179) target = $region12
      $region11: #{minigrid_mlp_target_embedding_forward.1} parent=5 // pred_region
        %s183 = ssub.s32 %s12, 1
        // Predicated region
        $region13: #{minigrid_mlp_target_embedding_forward.1} parent=11 // pred_check
          %p184 = pneg %p59
        $region14: #{minigrid_mlp_target_embedding_forward.1} parent=11 // pred_check_branch
          %186 = sbr.rel (%p184) target = $region16
        $region15: #{minigrid_mlp_target_embedding_forward.1} parent=11 // pred_region
          _
        $region16: #{minigrid_mlp_target_embedding_forward.1} parent=11 // pred_fallthru
          _
        // Predicated region
        $region17: #{minigrid_mlp_target_embedding_forward.1} parent=11 // pred_check
          %p187 = pneg %p80
        $region18: #{minigrid_mlp_target_embedding_forward.1} parent=11 // pred_check_branch
          %189 = sbr.rel (%p187) target = $region20
        $region19: #{minigrid_mlp_target_embedding_forward.1} parent=11 // pred_region
          _
        $region20: #{minigrid_mlp_target_embedding_forward.1} parent=11 // pred_fallthru
          _
        // Predicated region
        $region21: #{minigrid_mlp_target_embedding_forward.1} parent=11 // pred_check
          %p190 = pneg %p101
        $region22: #{minigrid_mlp_target_embedding_forward.1} parent=11 // pred_check_branch
          %192 = sbr.rel (%p190) target = $region24
        $region23: #{minigrid_mlp_target_embedding_forward.1} parent=11 // pred_region
          _
        $region24: #{minigrid_mlp_target_embedding_forward.1} parent=11 // pred_fallthru
          _
        // Predicated region
        $region25: #{minigrid_mlp_target_embedding_forward.1} parent=11 // pred_check
          %p193 = pneg %p122
        $region26: #{minigrid_mlp_target_embedding_forward.1} parent=11 // pred_check_branch
          %195 = sbr.rel (%p193) target = $region28
        $region27: #{minigrid_mlp_target_embedding_forward.1} parent=11 // pred_region
          _
        $region28: #{minigrid_mlp_target_embedding_forward.1} parent=11 // pred_fallthru
          _
        // Predicated region
        $region29: #{minigrid_mlp_target_embedding_forward.1} parent=11 // pred_check
          %p196 = pneg %p143
        $region30: #{minigrid_mlp_target_embedding_forward.1} parent=11 // pred_check_branch
          %198 = sbr.rel (%p196) target = $region32
        $region31: #{minigrid_mlp_target_embedding_forward.1} parent=11 // pred_region
          _
        $region32: #{minigrid_mlp_target_embedding_forward.1} parent=11 // pred_fallthru
          _
      $region12: #{minigrid_mlp_target_embedding_forward.1} parent=5 // pred_fallthru
        _
      %p199 = scmp.lt.s32.totalorder %s12, 4
      // Predicated region
      $region33: #{minigrid_mlp_target_embedding_forward.1} parent=5 // pred_check
        %p200 = pneg %p199
      $region34: #{minigrid_mlp_target_embedding_forward.1} parent=5 // pred_check_branch
        %202 = sbr.rel (%p200) target = $region36
      $region35: #{minigrid_mlp_target_embedding_forward.1} parent=5 // pred_region
        // Predicated region
        $region37: #{minigrid_mlp_target_embedding_forward.1} parent=35 // pred_check
          %p203 = pneg %p32
        $region38: #{minigrid_mlp_target_embedding_forward.1} parent=35 // pred_check_branch
          %205 = sbr.rel (%p203) target = $region40
        $region39: #{minigrid_mlp_target_embedding_forward.1} parent=35 // pred_region
          %s206 = smul.u32 32, %s12
          %s207 = ssub.s32 125, %s206
          %p208 = scmp.lt.s32.totalorder %s207, 32
          %s209 = scalar_select %p208, %s207, 32
          %s210 = smul.u32 128, %s209
          %s211 = smul.u32 %s210, 2
          %p212 = scmp.lt.s32.totalorder %s206, 124
          %s213 = scalar_select %p212, %s206, 124
          %s214 = smul.addr %s213, 2
          %s215 = smul.addr %s214, 8
          %s216 = scalar_lea.vmem %s0, %s215
          %s217 = smul.u32 32, %s12
          %s218 = ssub.s32 125, %s217
          %p219 = scmp.lt.s32.totalorder %s218, 32
          %s220 = scalar_select %p219, %s218, 32
          %s221 = smul.u32 128, %s220
          %s222 = smul.u32 %s221, 2
        $region40: #{minigrid_mlp_target_embedding_forward.1} parent=35 // pred_fallthru
          _
      $region36: #{minigrid_mlp_target_embedding_forward.1} parent=5 // pred_fallthru
        _
      %p223 = scmp.le.s32.totalorder 1, %s12
      %p224 = scmp.lt.s32.totalorder %s12, 5
      %p225 = pnand %p223, %p224
      %p226 = pneg %p225
      // Predicated region
      $region41: #{minigrid_mlp_target_embedding_forward.1} parent=5 // pred_check
        _
      $region42: #{minigrid_mlp_target_embedding_forward.1} parent=5 // pred_check_branch
        %228 = sbr.rel (%p225) target = $region44
      $region43: #{minigrid_mlp_target_embedding_forward.1} parent=5 // pred_region
        %s229 = ssub.s32 %s12, 1
        %s230 = smul.u32 32, %s17
        %s231 = ssub.s32 125, %s230
        %p232 = scmp.lt.s32.totalorder %s231, 32
        %s233 = scalar_select %p232, %s231, 32
        %s234 = smul.u32 128, %s233
        %s235 = smul.u32 %s234, 2
        %p236 = scmp.lt.s32.totalorder %s230, 124
        %s237 = scalar_select %p236, %s230, 124
        %s238 = smul.addr %s237, 2
        %s239 = smul.addr %s238, 8
        %s240 = scalar_lea.vmem %s0, %s239
        %p241 = pneg %p38
        %p242 = pneg %p35
        %p243 = pneg %p59
        %p244 = pneg %p56
        %p245 = pneg %p80
        %p246 = pneg %p77
        %p247 = pneg %p101
        %p248 = pneg %p98
        %p249 = pneg %p122
        %p250 = pneg %p119
        %p251 = pneg %p143
        %p252 = pneg %p140
        %p253 = pneg %p169
        %p254 = pneg %p166
        %s255 = sand.u32 %s156, 1
        %s256 = sand.u32 %s156, 1
        %s257 = smul.addr %s256, 128
        %s258 = scalar_lea.vmem [#allocation2], %s257
        %s259 = smul.u32 32, %s17
        %s260 = ssub.s32 125, %s259
        %p261 = scmp.lt.s32.totalorder %s260, 32
        %s262 = scalar_select %p261, %s260, 32
        %s263 = smul.u32 128, %s262
        %s264 = smul.u32 %s263, 2
        %p265 = scmp.lt.s32.totalorder %s259, 124
        %s266 = scalar_select %p265, %s259, 124
        %s267 = smul.addr %s266, 2
        %s268 = smul.addr %s267, 8
        %s269 = scalar_lea.vmem %s0, %s268
        %s270 = smul.u32 32, %s17
        %s271 = ssub.s32 125, %s270
        %p272 = scmp.lt.s32.totalorder %s271, 32
        %s273 = scalar_select %p272, %s271, 32
        %s274 = smul.u32 128, %s273
        %s275 = smul.u32 %s274, 2
        %s276 = smul.u32 32, %s17
        %s277 = ssub.s32 125, %s276
        %p278 = scmp.lt.s32.totalorder %s277, 32
        %s279 = scalar_select %p278, %s277, 32
        %s280 = smul.u32 64, %s279
        %v282 = vld [vmem:[%s269] sm:$0xff]
        %v283 = vld [vmem:[%s269 + $0x8] sm:$0xff]
        %v284 = vld [vmem:[%s269 + $0x10] sm:$0xff]
        %v285 = vld [vmem:[%s269 + $0x18] sm:$0xff]
        %v286 = vld [vmem:[%s269 + $0x20] sm:$0xff]
        %v287 = vld [vmem:[%s269 + $0x28] sm:$0xff]
        %v288 = vld [vmem:[%s269 + $0x30] sm:$0xff]
        %v289 = vld [vmem:[%s269 + $0x38] sm:$0xff]
        %v290 = vld [vmem:[%s269 + $0x40] sm:$0xff]
        %v291 = vld [vmem:[%s269 + $0x48] sm:$0xff]
        %v292 = vld [vmem:[%s269 + $0x50] sm:$0xff]
        %v293 = vld [vmem:[%s269 + $0x58] sm:$0xff]
        %v294 = vld [vmem:[%s269 + $0x60] sm:$0xff]
        %v295 = vld [vmem:[%s269 + $0x68] sm:$0xff]
        %v296 = vld [vmem:[%s269 + $0x70] sm:$0xff]
        %v297 = vld [vmem:[%s269 + $0x78] sm:$0xff]
        %v298 = vld [vmem:[%s269 + $0x80] sm:$0xff]
        %v299 = vld [vmem:[%s269 + $0x88] sm:$0xff]
        %v300 = vld [vmem:[%s269 + $0x90] sm:$0xff]
        %v301 = vld [vmem:[%s269 + $0x98] sm:$0xff]
        %v302 = vld [vmem:[%s269 + $0xa0] sm:$0xff]
        %v303 = vld [vmem:[%s269 + $0xa8] sm:$0xff]
        %v304 = vld [vmem:[%s269 + $0xb0] sm:$0xff]
        %v305 = vld [vmem:[%s269 + $0xb8] sm:$0xff]
        %v306 = vld [vmem:[%s269 + $0xc0] sm:$0xff]
        %v307 = vld [vmem:[%s269 + $0xc8] sm:$0xff]
        %v308 = vld [vmem:[%s269 + $0xd0] sm:$0xff]
        %v309 = vld [vmem:[%s269 + $0xd8] sm:$0xff]
        %v310 = vld [vmem:[%s269 + $0xe0] sm:$0xff]
        %v311 = vld [vmem:[%s269 + $0xe8] sm:$0xff]
        %v312 = vld [vmem:[%s269 + $0xf0] sm:$0xff]
        %v313 = vld [vmem:[%s269 + $0xf8] sm:$0xff]
        %v314 = vld [vmem:[%s269 + $0x100] sm:$0xff]
        %v315 = vld [vmem:[%s269 + $0x108] sm:$0xff]
        %v316 = vld [vmem:[%s269 + $0x110] sm:$0xff]
        %v317 = vld [vmem:[%s269 + $0x118] sm:$0xff]
        %v318 = vld [vmem:[%s269 + $0x120] sm:$0xff]
        %v319 = vld [vmem:[%s269 + $0x128] sm:$0xff]
        %v320 = vld [vmem:[%s269 + $0x130] sm:$0xff]
        %v321 = vld [vmem:[%s269 + $0x138] sm:$0xff]
        %v322 = vld [vmem:[%s269 + $0x140] sm:$0xff]
        %v323 = vld [vmem:[%s269 + $0x148] sm:$0xff]
        %v324 = vld [vmem:[%s269 + $0x150] sm:$0xff]
        %v325 = vld [vmem:[%s269 + $0x158] sm:$0xff]
        %v326 = vld [vmem:[%s269 + $0x160] sm:$0xff]
        %v327 = vld [vmem:[%s269 + $0x168] sm:$0xff]
        %v328 = vld [vmem:[%s269 + $0x170] sm:$0xff]
        %v329 = vld [vmem:[%s269 + $0x178] sm:$0xff]
        %v330 = vld [vmem:[%s269 + $0x180] sm:$0xff]
        %v331 = vld [vmem:[%s269 + $0x188] sm:$0xff]
        %v332 = vld [vmem:[%s269 + $0x190] sm:$0xff]
        %v333 = vld [vmem:[%s269 + $0x198] sm:$0xff]
        %v334 = vld [vmem:[%s269 + $0x1a0] sm:$0xff]
        %v335 = vld [vmem:[%s269 + $0x1a8] sm:$0xff]
        %v336 = vld [vmem:[%s269 + $0x1b0] sm:$0xff]
        %v337 = vld [vmem:[%s269 + $0x1b8] sm:$0xff]
        %v338 = vld [vmem:[%s269 + $0x1c0] sm:$0xff]
        %v339 = vld [vmem:[%s269 + $0x1c8] sm:$0xff]
        %v340 = vld [vmem:[%s269 + $0x1d0] sm:$0xff]
        %v341 = vld [vmem:[%s269 + $0x1d8] sm:$0xff]
        %v342 = vld [vmem:[%s269 + $0x1e0] sm:$0xff]
        %v343 = vld [vmem:[%s269 + $0x1e8] sm:$0xff]
        %v344 = vld [vmem:[%s269 + $0x1f0] sm:$0xff]
        %v345 = vld [vmem:[%s269 + $0x1f8] sm:$0xff]
        %v346 = vpack.c.bf16 %v284, %v282
        %v347 = vpack.c.bf16 %v285, %v283
        %v348 = vpack.c.bf16 %v288, %v286
        %v349 = vpack.c.bf16 %v289, %v287
        %v350 = vpack.c.bf16 %v292, %v290
        %v351 = vpack.c.bf16 %v293, %v291
        %v352 = vpack.c.bf16 %v296, %v294
        %v353 = vpack.c.bf16 %v297, %v295
        %v354 = vpack.c.bf16 %v300, %v298
        %v355 = vpack.c.bf16 %v301, %v299
        %v356 = vpack.c.bf16 %v304, %v302
        %v357 = vpack.c.bf16 %v305, %v303
        %v358 = vpack.c.bf16 %v308, %v306
        %v359 = vpack.c.bf16 %v309, %v307
        %v360 = vpack.c.bf16 %v312, %v310
        %v361 = vpack.c.bf16 %v313, %v311
        %v362 = vpack.c.bf16 %v316, %v314
        %v363 = vpack.c.bf16 %v317, %v315
        %v364 = vpack.c.bf16 %v320, %v318
        %v365 = vpack.c.bf16 %v321, %v319
        %v366 = vpack.c.bf16 %v324, %v322
        %v367 = vpack.c.bf16 %v325, %v323
        %v368 = vpack.c.bf16 %v328, %v326
        %v369 = vpack.c.bf16 %v329, %v327
        %v370 = vpack.c.bf16 %v332, %v330
        %v371 = vpack.c.bf16 %v333, %v331
        %v372 = vpack.c.bf16 %v336, %v334
        %v373 = vpack.c.bf16 %v337, %v335
        %v374 = vpack.c.bf16 %v340, %v338
        %v375 = vpack.c.bf16 %v341, %v339
        %v376 = vpack.c.bf16 %v344, %v342
        %v377 = vpack.c.bf16 %v345, %v343
        %v378 = vld [vmem:[%s1] sm:$0xf]
        %v379 = vld [vmem:[%s1 + $0x4] sm:$0xf]
        %v380 = vld [vmem:[%s1 + $0x8] sm:$0xf]
        %v381 = vld [vmem:[%s1 + $0xc] sm:$0xf]
        %v382 = vld [vmem:[%s1 + $0x10] sm:$0xf]
        %v383 = vld [vmem:[%s1 + $0x14] sm:$0xf]
        %v384 = vld [vmem:[%s1 + $0x18] sm:$0xf]
        %v385 = vld [vmem:[%s1 + $0x1c] sm:$0xf]
        %v386 = vld [vmem:[%s1 + $0x20] sm:$0xf]
        %v387 = vld [vmem:[%s1 + $0x24] sm:$0xf]
        %v388 = vld [vmem:[%s1 + $0x28] sm:$0xf]
        %v389 = vld [vmem:[%s1 + $0x2c] sm:$0xf]
        %v390 = vld [vmem:[%s1 + $0x30] sm:$0xf]
        %v391 = vld [vmem:[%s1 + $0x34] sm:$0xf]
        %v392 = vld [vmem:[%s1 + $0x38] sm:$0xf]
        %v393 = vld [vmem:[%s1 + $0x3c] sm:$0xf]
        %v394 = vld [vmem:[%s1 + $0x40] sm:$0xf]
        %v395 = vld [vmem:[%s1 + $0x44] sm:$0xf]
        %v396 = vld [vmem:[%s1 + $0x48] sm:$0xf]
        %v397 = vld [vmem:[%s1 + $0x4c] sm:$0xf]
        %v398 = vld [vmem:[%s1 + $0x50] sm:$0xf]
        %v399 = vld [vmem:[%s1 + $0x54] sm:$0xf]
        %v400 = vld [vmem:[%s1 + $0x58] sm:$0xf]
        %v401 = vld [vmem:[%s1 + $0x5c] sm:$0xf]
        %v402 = vld [vmem:[%s1 + $0x60] sm:$0xf]
        %v403 = vld [vmem:[%s1 + $0x64] sm:$0xf]
        %v404 = vld [vmem:[%s1 + $0x68] sm:$0xf]
        %v405 = vld [vmem:[%s1 + $0x6c] sm:$0xf]
        %v406 = vld [vmem:[%s1 + $0x70] sm:$0xf]
        %v407 = vld [vmem:[%s1 + $0x74] sm:$0xf]
        %v408 = vld [vmem:[%s1 + $0x78] sm:$0xf]
        %v409 = vld [vmem:[%s1 + $0x7c] sm:$0xf]
        %v410 = vld [vmem:[%s5] sm:$0x1]
        %v411 = vlaneseq
        %v412 = vshrl.u32 %v411, 7
        %v413 = vsub.s32 0, %v412
        %v414 = vrot.slane %v410, %v413
        %v447 = vunpack.c.l.b16 %v378
        %v448 = vunpack.c.l.b16 %v379
        %v449 = vunpack.c.l.b16 %v380
        %v450 = vunpack.c.l.b16 %v381
        %v451 = vunpack.c.l.b16 %v382
        %v452 = vunpack.c.l.b16 %v383
        %v453 = vunpack.c.l.b16 %v384
        %v454 = vunpack.c.l.b16 %v385
        %v455 = vunpack.c.l.b16 %v386
        %v456 = vunpack.c.l.b16 %v387
        %v457 = vunpack.c.l.b16 %v388
        %v458 = vunpack.c.l.b16 %v389
        %v459 = vunpack.c.l.b16 %v390
        %v460 = vunpack.c.l.b16 %v391
        %v461 = vunpack.c.l.b16 %v392
        %v462 = vunpack.c.l.b16 %v393
        %v463 = vunpack.c.l.b16 %v394
        %v464 = vunpack.c.l.b16 %v395
        %v465 = vunpack.c.l.b16 %v396
        %v466 = vunpack.c.l.b16 %v397
        %v467 = vunpack.c.l.b16 %v398
        %v468 = vunpack.c.l.b16 %v399
        %v469 = vunpack.c.l.b16 %v400
        %v470 = vunpack.c.l.b16 %v401
        %v471 = vunpack.c.l.b16 %v402
        %v472 = vunpack.c.l.b16 %v403
        %v473 = vunpack.c.l.b16 %v404
        %v474 = vunpack.c.l.b16 %v405
        %v475 = vunpack.c.l.b16 %v406
        %v476 = vunpack.c.l.b16 %v407
        %v477 = vunpack.c.l.b16 %v408
        %v478 = vunpack.c.l.b16 %v409
        %v479 = vpack.c.b16 %v448, %v447
        %v480 = vpack.c.b16 %v450, %v449
        %v481 = vpack.c.b16 %v452, %v451
        %v482 = vpack.c.b16 %v454, %v453
        %v483 = vpack.c.b16 %v456, %v455
        %v484 = vpack.c.b16 %v458, %v457
        %v485 = vpack.c.b16 %v460, %v459
        %v486 = vpack.c.b16 %v462, %v461
        %v487 = vpack.c.b16 %v464, %v463
        %v488 = vpack.c.b16 %v466, %v465
        %v489 = vpack.c.b16 %v468, %v467
        %v490 = vpack.c.b16 %v470, %v469
        %v491 = vpack.c.b16 %v472, %v471
        %v492 = vpack.c.b16 %v474, %v473
        %v493 = vpack.c.b16 %v476, %v475
        %v494 = vpack.c.b16 %v478, %v477
        %511 = vmatprep.subr.bf16.mxu0 0
        %512 = vmatpush1.bf16.msra.mxu0 %v479
        %513 = vmatprep.subr.bf16.mxu0 0
        %514 = vmatpush1.bf16.msra.mxu0 %v480
        %515 = vmatprep.subr.bf16.mxu0 0
        %516 = vmatpush1.bf16.msra.mxu0 %v481
        %517 = vmatprep.subr.bf16.mxu0 0
        %518 = vmatpush1.bf16.msra.mxu0 %v482
        %519 = vmatprep.subr.bf16.mxu0 0
        %520 = vmatpush1.bf16.msra.mxu0 %v483
        %521 = vmatprep.subr.bf16.mxu0 0
        %522 = vmatpush1.bf16.msra.mxu0 %v484
        %523 = vmatprep.subr.bf16.mxu0 0
        %524 = vmatpush1.bf16.msra.mxu0 %v485
        %525 = vmatprep.subr.bf16.mxu0 0
        %526 = vmatpush1.bf16.msra.mxu0 %v486
        %527 = vmatprep.subr.bf16.mxu0 0
        %528 = vmatpush1.bf16.msra.mxu0 %v487
        %529 = vmatprep.subr.bf16.mxu0 0
        %530 = vmatpush1.bf16.msra.mxu0 %v488
        %531 = vmatprep.subr.bf16.mxu0 0
        %532 = vmatpush1.bf16.msra.mxu0 %v489
        %533 = vmatprep.subr.bf16.mxu0 0
        %534 = vmatpush1.bf16.msra.mxu0 %v490
        %535 = vmatprep.subr.bf16.mxu0 0
        %536 = vmatpush1.bf16.msra.mxu0 %v491
        %537 = vmatprep.subr.bf16.mxu0 0
        %538 = vmatpush1.bf16.msra.mxu0 %v492
        %539 = vmatprep.subr.bf16.mxu0 0
        %540 = vmatpush1.bf16.msra.mxu0 %v493
        %541 = vmatprep.subr.bf16.mxu0 0
        %542 = vmatpush1.bf16.msra.mxu0 %v494
        %543 = vmatprep.mubr.bf16.mxu0 %v347
        %544 = vmatmul.mubr.bf16.gmra.mrb[0].mxu0 %v346
        %v545 = vpop.f32.mrb[0].mxu0
        %v546 = vadd.f32 %v414, %v545
        %v547 = vpop.f32.mrb[0].mxu0
        %v548 = vpop.f32.mrb[0].mxu0
        %v549 = vadd.f32 %v414, %v548
        %v550 = vpop.f32.mrb[0].mxu0
        %551 = vmatprep.mubr.bf16.mxu0 %v349
        %552 = vmatmul.mubr.bf16.gmra.mrb[0].mxu0 %v348
        %v553 = vpop.f32.mrb[0].mxu0
        %v554 = vadd.f32 %v414, %v553
        %v555 = vpop.f32.mrb[0].mxu0
        %v556 = vpop.f32.mrb[0].mxu0
        %v557 = vadd.f32 %v414, %v556
        %v558 = vpop.f32.mrb[0].mxu0
        %559 = vmatprep.mubr.bf16.mxu0 %v351
        %560 = vmatmul.mubr.bf16.gmra.mrb[0].mxu0 %v350
        %v561 = vpop.f32.mrb[0].mxu0
        %v562 = vadd.f32 %v414, %v561
        %v563 = vpop.f32.mrb[0].mxu0
        %v564 = vpop.f32.mrb[0].mxu0
        %v565 = vadd.f32 %v414, %v564
        %v566 = vpop.f32.mrb[0].mxu0
        %567 = vmatprep.mubr.bf16.mxu0 %v353
        %568 = vmatmul.mubr.bf16.gmra.mrb[0].mxu0 %v352
        %v569 = vpop.f32.mrb[0].mxu0
        %v570 = vadd.f32 %v414, %v569
        %v571 = vpop.f32.mrb[0].mxu0
        %v572 = vpop.f32.mrb[0].mxu0
        %v573 = vadd.f32 %v414, %v572
        %v574 = vpop.f32.mrb[0].mxu0
        %575 = vmatprep.mubr.bf16.mxu0 %v355
        %576 = vmatmul.mubr.bf16.gmra.mrb[0].mxu0 %v354
        %v577 = vpop.f32.mrb[0].mxu0
        %v578 = vadd.f32 %v414, %v577
        %v579 = vpop.f32.mrb[0].mxu0
        %v580 = vpop.f32.mrb[0].mxu0
        %v581 = vadd.f32 %v414, %v580
        %v582 = vpop.f32.mrb[0].mxu0
        %583 = vmatprep.mubr.bf16.mxu0 %v357
        %584 = vmatmul.mubr.bf16.gmra.mrb[0].mxu0 %v356
        %v585 = vpop.f32.mrb[0].mxu0
        %v586 = vadd.f32 %v414, %v585
        %v587 = vpop.f32.mrb[0].mxu0
        %v588 = vpop.f32.mrb[0].mxu0
        %v589 = vadd.f32 %v414, %v588
        %v590 = vpop.f32.mrb[0].mxu0
        %591 = vmatprep.mubr.bf16.mxu0 %v359
        %592 = vmatmul.mubr.bf16.gmra.mrb[0].mxu0 %v358
        %v593 = vpop.f32.mrb[0].mxu0
        %v594 = vadd.f32 %v414, %v593
        %v595 = vpop.f32.mrb[0].mxu0
        %v596 = vpop.f32.mrb[0].mxu0
        %v597 = vadd.f32 %v414, %v596
        %v598 = vpop.f32.mrb[0].mxu0
        %599 = vmatprep.mubr.bf16.mxu0 %v361
        %600 = vmatmul.mubr.bf16.gmra.mrb[0].mxu0 %v360
        %v601 = vpop.f32.mrb[0].mxu0
        %v602 = vadd.f32 %v414, %v601
        %v603 = vpop.f32.mrb[0].mxu0
        %v604 = vpop.f32.mrb[0].mxu0
        %v605 = vadd.f32 %v414, %v604
        %v606 = vpop.f32.mrb[0].mxu0
        %607 = vmatprep.mubr.bf16.mxu0 %v363
        %608 = vmatmul.mubr.bf16.gmra.mrb[0].mxu0 %v362
        %v609 = vpop.f32.mrb[0].mxu0
        %v610 = vadd.f32 %v414, %v609
        %v611 = vpop.f32.mrb[0].mxu0
        %v612 = vpop.f32.mrb[0].mxu0
        %v613 = vadd.f32 %v414, %v612
        %v614 = vpop.f32.mrb[0].mxu0
        %615 = vmatprep.mubr.bf16.mxu0 %v365
        %616 = vmatmul.mubr.bf16.gmra.mrb[0].mxu0 %v364
        %v617 = vpop.f32.mrb[0].mxu0
        %v618 = vadd.f32 %v414, %v617
        %v619 = vpop.f32.mrb[0].mxu0
        %v620 = vpop.f32.mrb[0].mxu0
        %v621 = vadd.f32 %v414, %v620
        %v622 = vpop.f32.mrb[0].mxu0
        %623 = vmatprep.mubr.bf16.mxu0 %v367
        %624 = vmatmul.mubr.bf16.gmra.mrb[0].mxu0 %v366
        %v625 = vpop.f32.mrb[0].mxu0
        %v626 = vadd.f32 %v414, %v625
        %v627 = vpop.f32.mrb[0].mxu0
        %v628 = vpop.f32.mrb[0].mxu0
        %v629 = vadd.f32 %v414, %v628
        %v630 = vpop.f32.mrb[0].mxu0
        %631 = vmatprep.mubr.bf16.mxu0 %v369
        %632 = vmatmul.mubr.bf16.gmra.mrb[0].mxu0 %v368
        %v633 = vpop.f32.mrb[0].mxu0
        %v634 = vadd.f32 %v414, %v633
        %v635 = vpop.f32.mrb[0].mxu0
        %v636 = vpop.f32.mrb[0].mxu0
        %v637 = vadd.f32 %v414, %v636
        %v638 = vpop.f32.mrb[0].mxu0
        %639 = vmatprep.mubr.bf16.mxu0 %v371
        %640 = vmatmul.mubr.bf16.gmra.mrb[0].mxu0 %v370
        %v641 = vpop.f32.mrb[0].mxu0
        %v642 = vadd.f32 %v414, %v641
        %v643 = vpop.f32.mrb[0].mxu0
        %v644 = vpop.f32.mrb[0].mxu0
        %v645 = vadd.f32 %v414, %v644
        %v646 = vpop.f32.mrb[0].mxu0
        %647 = vmatprep.mubr.bf16.mxu0 %v373
        %648 = vmatmul.mubr.bf16.gmra.mrb[0].mxu0 %v372
        %v649 = vpop.f32.mrb[0].mxu0
        %v650 = vadd.f32 %v414, %v649
        %v651 = vpop.f32.mrb[0].mxu0
        %v652 = vpop.f32.mrb[0].mxu0
        %v653 = vadd.f32 %v414, %v652
        %v654 = vpop.f32.mrb[0].mxu0
        %655 = vmatprep.mubr.bf16.mxu0 %v375
        %656 = vmatmul.mubr.bf16.gmra.mrb[0].mxu0 %v374
        %v657 = vpop.f32.mrb[0].mxu0
        %v658 = vadd.f32 %v414, %v657
        %v659 = vpop.f32.mrb[0].mxu0
        %v660 = vpop.f32.mrb[0].mxu0
        %v661 = vadd.f32 %v414, %v660
        %v662 = vpop.f32.mrb[0].mxu0
        %663 = vmatprep.mubr.bf16.mxu0 %v377
        %664 = vmatmul.mubr.bf16.gmra.mrb[0].mxu0 %v376
        %v665 = vpop.f32.mrb[0].mxu0
        %v666 = vadd.f32 %v414, %v665
        %v667 = vpop.f32.mrb[0].mxu0
        %v668 = vpop.f32.mrb[0].mxu0
        %v669 = vadd.f32 %v414, %v668
        %v670 = vpop.f32.mrb[0].mxu0
        %671 = vdwg.mxu0
        %v672 = vmax.f32 %v546, 0.0
        %v673 = vmax.f32 %v549, 0.0
        %v674 = vmax.f32 %v554, 0.0
        %v675 = vmax.f32 %v557, 0.0
        %v676 = vmax.f32 %v562, 0.0
        %v677 = vmax.f32 %v565, 0.0
        %v678 = vmax.f32 %v570, 0.0
        %v679 = vmax.f32 %v573, 0.0
        %v680 = vmax.f32 %v578, 0.0
        %v681 = vmax.f32 %v581, 0.0
        %v682 = vmax.f32 %v586, 0.0
        %v683 = vmax.f32 %v589, 0.0
        %v684 = vmax.f32 %v594, 0.0
        %v685 = vmax.f32 %v597, 0.0
        %v686 = vmax.f32 %v602, 0.0
        %v687 = vmax.f32 %v605, 0.0
        %v688 = vmax.f32 %v610, 0.0
        %v689 = vmax.f32 %v613, 0.0
        %v690 = vmax.f32 %v618, 0.0
        %v691 = vmax.f32 %v621, 0.0
        %v692 = vmax.f32 %v626, 0.0
        %v693 = vmax.f32 %v629, 0.0
        %v694 = vmax.f32 %v634, 0.0
        %v695 = vmax.f32 %v637, 0.0
        %v696 = vmax.f32 %v642, 0.0
        %v697 = vmax.f32 %v645, 0.0
        %v698 = vmax.f32 %v650, 0.0
        %v699 = vmax.f32 %v653, 0.0
        %v700 = vmax.f32 %v658, 0.0
        %v701 = vmax.f32 %v661, 0.0
        %v702 = vmax.f32 %v666, 0.0
        %v703 = vmax.f32 %v669, 0.0
        %v704 = vpack.c.bf16 %v673, %v672
        %v705 = vpack.c.bf16 %v675, %v674
        %v706 = vpack.c.bf16 %v677, %v676
        %v707 = vpack.c.bf16 %v679, %v678
        %v708 = vpack.c.bf16 %v681, %v680
        %v709 = vpack.c.bf16 %v683, %v682
        %v710 = vpack.c.bf16 %v685, %v684
        %v711 = vpack.c.bf16 %v687, %v686
        %v712 = vpack.c.bf16 %v689, %v688
        %v713 = vpack.c.bf16 %v691, %v690
        %v714 = vpack.c.bf16 %v693, %v692
        %v715 = vpack.c.bf16 %v695, %v694
        %v716 = vpack.c.bf16 %v697, %v696
        %v717 = vpack.c.bf16 %v699, %v698
        %v718 = vpack.c.bf16 %v701, %v700
        %v719 = vpack.c.bf16 %v703, %v702
        %v720 = vld [vmem:[%s2] sm:$0xf]
        %v721 = vld [vmem:[%s2 + $0x4] sm:$0xf]
        %v722 = vld [vmem:[%s2 + $0x8] sm:$0xf]
        %v723 = vld [vmem:[%s2 + $0xc] sm:$0xf]
        %v724 = vld [vmem:[%s2 + $0x10] sm:$0xf]
        %v725 = vld [vmem:[%s2 + $0x14] sm:$0xf]
        %v726 = vld [vmem:[%s2 + $0x18] sm:$0xf]
        %v727 = vld [vmem:[%s2 + $0x1c] sm:$0xf]
        %v728 = vld [vmem:[%s2 + $0x20] sm:$0xf]
        %v729 = vld [vmem:[%s2 + $0x24] sm:$0xf]
        %v730 = vld [vmem:[%s2 + $0x28] sm:$0xf]
        %v731 = vld [vmem:[%s2 + $0x2c] sm:$0xf]
        %v732 = vld [vmem:[%s2 + $0x30] sm:$0xf]
        %v733 = vld [vmem:[%s2 + $0x34] sm:$0xf]
        %v734 = vld [vmem:[%s2 + $0x38] sm:$0xf]
        %v735 = vld [vmem:[%s2 + $0x3c] sm:$0xf]
        %v736 = vld [vmem:[%s5 + $0x1] sm:$0x1]
        %v737 = vlaneseq
        %v738 = vshrl.u32 %v737, 7
        %v739 = vsub.s32 0, %v738
        %v740 = vrot.slane %v736, %v739
        %v757 = vunpack.c.l.b16 %v720
        %v758 = vunpack.c.l.b16 %v721
        %v759 = vunpack.c.l.b16 %v722
        %v760 = vunpack.c.l.b16 %v723
        %v761 = vunpack.c.l.b16 %v724
        %v762 = vunpack.c.l.b16 %v725
        %v763 = vunpack.c.l.b16 %v726
        %v764 = vunpack.c.l.b16 %v727
        %v765 = vunpack.c.l.b16 %v728
        %v766 = vunpack.c.l.b16 %v729
        %v767 = vunpack.c.l.b16 %v730
        %v768 = vunpack.c.l.b16 %v731
        %v769 = vunpack.c.l.b16 %v732
        %v770 = vunpack.c.l.b16 %v733
        %v771 = vunpack.c.l.b16 %v734
        %v772 = vunpack.c.l.b16 %v735
        %v773 = vpack.c.b16 %v758, %v757
        %v774 = vpack.c.b16 %v760, %v759
        %v775 = vpack.c.b16 %v762, %v761
        %v776 = vpack.c.b16 %v764, %v763
        %v777 = vpack.c.b16 %v766, %v765
        %v778 = vpack.c.b16 %v768, %v767
        %v779 = vpack.c.b16 %v770, %v769
        %v780 = vpack.c.b16 %v772, %v771
        %789 = vmatprep.subr.bf16.mxu0 0
        %790 = vmatpush1.bf16.msra.mxu0 %v773
        %791 = vmatprep.subr.bf16.mxu0 0
        %792 = vmatpush1.bf16.msra.mxu0 %v774
        %793 = vmatprep.subr.bf16.mxu0 0
        %794 = vmatpush1.bf16.msra.mxu0 %v775
        %795 = vmatprep.subr.bf16.mxu0 0
        %796 = vmatpush1.bf16.msra.mxu0 %v776
        %797 = vmatprep.subr.bf16.mxu0 0
        %798 = vmatpush1.bf16.msra.mxu0 %v777
        %799 = vmatprep.subr.bf16.mxu0 0
        %800 = vmatpush1.bf16.msra.mxu0 %v778
        %801 = vmatprep.subr.bf16.mxu0 0
        %802 = vmatpush1.bf16.msra.mxu0 %v779
        %803 = vmatprep.subr.bf16.mxu0 0
        %804 = vmatpush1.bf16.msra.mxu0 %v780
        %805 = vmatprep.subr.bf16.mxu0 0
        %806 = vmatpush1.bf16.msra.mxu0 0
        %807 = vmatprep.subr.bf16.mxu0 0
        %808 = vmatpush1.bf16.msra.mxu0 0
        %809 = vmatprep.subr.bf16.mxu0 0
        %810 = vmatpush1.bf16.msra.mxu0 0
        %811 = vmatprep.subr.bf16.mxu0 0
        %812 = vmatpush1.bf16.msra.mxu0 0
        %813 = vmatprep.subr.bf16.mxu0 0
        %814 = vmatpush1.bf16.msra.mxu0 0
        %815 = vmatprep.subr.bf16.mxu0 0
        %816 = vmatpush1.bf16.msra.mxu0 0
        %817 = vmatprep.subr.bf16.mxu0 0
        %818 = vmatpush1.bf16.msra.mxu0 0
        %819 = vmatprep.subr.bf16.mxu0 0
        %820 = vmatpush1.bf16.msra.mxu0 0
        %821 = vmatprep.mubr.bf16.mxu0 0
        %822 = vmatmul.mubr.bf16.gmra.mrb[0].mxu0 %v704
        %v823 = vpop.f32.mrb[0].mxu0
        %v824 = vadd.f32 %v740, %v823
        %v825 = vpop.f32.mrb[0].mxu0
        %v826 = vpop.f32.mrb[0].mxu0
        %v827 = vadd.f32 %v740, %v826
        %v828 = vpop.f32.mrb[0].mxu0
        %829 = vmatprep.mubr.bf16.mxu0 0
        %830 = vmatmul.mubr.bf16.gmra.mrb[0].mxu0 %v705
        %v831 = vpop.f32.mrb[0].mxu0
        %v832 = vadd.f32 %v740, %v831
        %v833 = vpop.f32.mrb[0].mxu0
        %v834 = vpop.f32.mrb[0].mxu0
        %v835 = vadd.f32 %v740, %v834
        %v836 = vpop.f32.mrb[0].mxu0
        %837 = vmatprep.mubr.bf16.mxu0 0
        %838 = vmatmul.mubr.bf16.gmra.mrb[0].mxu0 %v706
        %v839 = vpop.f32.mrb[0].mxu0
        %v840 = vadd.f32 %v740, %v839
        %v841 = vpop.f32.mrb[0].mxu0
        %v842 = vpop.f32.mrb[0].mxu0
        %v843 = vadd.f32 %v740, %v842
        %v844 = vpop.f32.mrb[0].mxu0
        %845 = vmatprep.mubr.bf16.mxu0 0
        %846 = vmatmul.mubr.bf16.gmra.mrb[0].mxu0 %v707
        %v847 = vpop.f32.mrb[0].mxu0
        %v848 = vadd.f32 %v740, %v847
        %v849 = vpop.f32.mrb[0].mxu0
        %v850 = vpop.f32.mrb[0].mxu0
        %v851 = vadd.f32 %v740, %v850
        %v852 = vpop.f32.mrb[0].mxu0
        %853 = vmatprep.mubr.bf16.mxu0 0
        %854 = vmatmul.mubr.bf16.gmra.mrb[0].mxu0 %v708
        %v855 = vpop.f32.mrb[0].mxu0
        %v856 = vadd.f32 %v740, %v855
        %v857 = vpop.f32.mrb[0].mxu0
        %v858 = vpop.f32.mrb[0].mxu0
        %v859 = vadd.f32 %v740, %v858
        %v860 = vpop.f32.mrb[0].mxu0
        %861 = vmatprep.mubr.bf16.mxu0 0
        %862 = vmatmul.mubr.bf16.gmra.mrb[0].mxu0 %v709
        %v863 = vpop.f32.mrb[0].mxu0
        %v864 = vadd.f32 %v740, %v863
        %v865 = vpop.f32.mrb[0].mxu0
        %v866 = vpop.f32.mrb[0].mxu0
        %v867 = vadd.f32 %v740, %v866
        %v868 = vpop.f32.mrb[0].mxu0
        %869 = vmatprep.mubr.bf16.mxu0 0
        %870 = vmatmul.mubr.bf16.gmra.mrb[0].mxu0 %v710
        %v871 = vpop.f32.mrb[0].mxu0
        %v872 = vadd.f32 %v740, %v871
        %v873 = vpop.f32.mrb[0].mxu0
        %v874 = vpop.f32.mrb[0].mxu0
        %v875 = vadd.f32 %v740, %v874
        %v876 = vpop.f32.mrb[0].mxu0
        %877 = vmatprep.mubr.bf16.mxu0 0
        %878 = vmatmul.mubr.bf16.gmra.mrb[0].mxu0 %v711
        %v879 = vpop.f32.mrb[0].mxu0
        %v880 = vadd.f32 %v740, %v879
        %v881 = vpop.f32.mrb[0].mxu0
        %v882 = vpop.f32.mrb[0].mxu0
        %v883 = vadd.f32 %v740, %v882
        %v884 = vpop.f32.mrb[0].mxu0
        %885 = vmatprep.mubr.bf16.mxu0 0
        %886 = vmatmul.mubr.bf16.gmra.mrb[0].mxu0 %v712
        %v887 = vpop.f32.mrb[0].mxu0
        %v888 = vadd.f32 %v740, %v887
        %v889 = vpop.f32.mrb[0].mxu0
        %v890 = vpop.f32.mrb[0].mxu0
        %v891 = vadd.f32 %v740, %v890
        %v892 = vpop.f32.mrb[0].mxu0
        %893 = vmatprep.mubr.bf16.mxu0 0
        %894 = vmatmul.mubr.bf16.gmra.mrb[0].mxu0 %v713
        %v895 = vpop.f32.mrb[0].mxu0
        %v896 = vadd.f32 %v740, %v895
        %v897 = vpop.f32.mrb[0].mxu0
        %v898 = vpop.f32.mrb[0].mxu0
        %v899 = vadd.f32 %v740, %v898
        %v900 = vpop.f32.mrb[0].mxu0
        %901 = vmatprep.mubr.bf16.mxu0 0
        %902 = vmatmul.mubr.bf16.gmra.mrb[0].mxu0 %v714
        %v903 = vpop.f32.mrb[0].mxu0
        %v904 = vadd.f32 %v740, %v903
        %v905 = vpop.f32.mrb[0].mxu0
        %v906 = vpop.f32.mrb[0].mxu0
        %v907 = vadd.f32 %v740, %v906
        %v908 = vpop.f32.mrb[0].mxu0
        %909 = vmatprep.mubr.bf16.mxu0 0
        %910 = vmatmul.mubr.bf16.gmra.mrb[0].mxu0 %v715
        %v911 = vpop.f32.mrb[0].mxu0
        %v912 = vadd.f32 %v740, %v911
        %v913 = vpop.f32.mrb[0].mxu0
        %v914 = vpop.f32.mrb[0].mxu0
        %v915 = vadd.f32 %v740, %v914
        %v916 = vpop.f32.mrb[0].mxu0
        %917 = vmatprep.mubr.bf16.mxu0 0
        %918 = vmatmul.mubr.bf16.gmra.mrb[0].mxu0 %v716
        %v919 = vpop.f32.mrb[0].mxu0
        %v920 = vadd.f32 %v740, %v919
        %v921 = vpop.f32.mrb[0].mxu0
        %v922 = vpop.f32.mrb[0].mxu0
        %v923 = vadd.f32 %v740, %v922
        %v924 = vpop.f32.mrb[0].mxu0
        %925 = vmatprep.mubr.bf16.mxu0 0
        %926 = vmatmul.mubr.bf16.gmra.mrb[0].mxu0 %v717
        %v927 = vpop.f32.mrb[0].mxu0
        %v928 = vadd.f32 %v740, %v927
        %v929 = vpop.f32.mrb[0].mxu0
        %v930 = vpop.f32.mrb[0].mxu0
        %v931 = vadd.f32 %v740, %v930
        %v932 = vpop.f32.mrb[0].mxu0
        %933 = vmatprep.mubr.bf16.mxu0 0
        %934 = vmatmul.mubr.bf16.gmra.mrb[0].mxu0 %v718
        %v935 = vpop.f32.mrb[0].mxu0
        %v936 = vadd.f32 %v740, %v935
        %v937 = vpop.f32.mrb[0].mxu0
        %v938 = vpop.f32.mrb[0].mxu0
        %v939 = vadd.f32 %v740, %v938
        %v940 = vpop.f32.mrb[0].mxu0
        %941 = vmatprep.mubr.bf16.mxu0 0
        %942 = vmatmul.mubr.bf16.gmra.mrb[0].mxu0 %v719
        %v943 = vpop.f32.mrb[0].mxu0
        %v944 = vadd.f32 %v740, %v943
        %v945 = vpop.f32.mrb[0].mxu0
        %v946 = vpop.f32.mrb[0].mxu0
        %v947 = vadd.f32 %v740, %v946
        %v948 = vpop.f32.mrb[0].mxu0
        %949 = vdwg.mxu0
        %v950 = vmax.f32 %v824, 0.0
        %v951 = vmax.f32 %v827, 0.0
        %v952 = vmax.f32 %v832, 0.0
        %v953 = vmax.f32 %v835, 0.0
        %v954 = vmax.f32 %v840, 0.0
        %v955 = vmax.f32 %v843, 0.0
        %v956 = vmax.f32 %v848, 0.0
        %v957 = vmax.f32 %v851, 0.0
        %v958 = vmax.f32 %v856, 0.0
        %v959 = vmax.f32 %v859, 0.0
        %v960 = vmax.f32 %v864, 0.0
        %v961 = vmax.f32 %v867, 0.0
        %v962 = vmax.f32 %v872, 0.0
        %v963 = vmax.f32 %v875, 0.0
        %v964 = vmax.f32 %v880, 0.0
        %v965 = vmax.f32 %v883, 0.0
        %v966 = vmax.f32 %v888, 0.0
        %v967 = vmax.f32 %v891, 0.0
        %v968 = vmax.f32 %v896, 0.0
        %v969 = vmax.f32 %v899, 0.0
        %v970 = vmax.f32 %v904, 0.0
        %v971 = vmax.f32 %v907, 0.0
        %v972 = vmax.f32 %v912, 0.0
        %v973 = vmax.f32 %v915, 0.0
        %v974 = vmax.f32 %v920, 0.0
        %v975 = vmax.f32 %v923, 0.0
        %v976 = vmax.f32 %v928, 0.0
        %v977 = vmax.f32 %v931, 0.0
        %v978 = vmax.f32 %v936, 0.0
        %v979 = vmax.f32 %v939, 0.0
        %v980 = vmax.f32 %v944, 0.0
        %v981 = vmax.f32 %v947, 0.0
        %v982 = vpack.c.bf16 %v951, %v950
        %v983 = vpack.c.bf16 %v953, %v952
        %v984 = vpack.c.bf16 %v955, %v954
        %v985 = vpack.c.bf16 %v957, %v956
        %v986 = vpack.c.bf16 %v959, %v958
        %v987 = vpack.c.bf16 %v961, %v960
        %v988 = vpack.c.bf16 %v963, %v962
        %v989 = vpack.c.bf16 %v965, %v964
        %v990 = vpack.c.bf16 %v967, %v966
        %v991 = vpack.c.bf16 %v969, %v968
        %v992 = vpack.c.bf16 %v971, %v970
        %v993 = vpack.c.bf16 %v973, %v972
        %v994 = vpack.c.bf16 %v975, %v974
        %v995 = vpack.c.bf16 %v977, %v976
        %v996 = vpack.c.bf16 %v979, %v978
        %v997 = vpack.c.bf16 %v981, %v980
        %v998 = vld [vmem:[%s3] sm:$0xf]
        %v999 = vld [vmem:[%s3 + $0x4] sm:$0xf]
        %v1000 = vld [vmem:[%s3 + $0x8] sm:$0xf]
        %v1001 = vld [vmem:[%s3 + $0xc] sm:$0xf]
        %v1002 = vld [vmem:[%s3 + $0x10] sm:$0xf]
        %v1003 = vld [vmem:[%s3 + $0x14] sm:$0xf]
        %v1004 = vld [vmem:[%s3 + $0x18] sm:$0xf]
        %v1005 = vld [vmem:[%s3 + $0x1c] sm:$0xf]
        %v1006 = vld [vmem:[%s3 + $0x20] sm:$0xf]
        %v1007 = vld [vmem:[%s3 + $0x24] sm:$0xf]
        %v1008 = vld [vmem:[%s3 + $0x28] sm:$0xf]
        %v1009 = vld [vmem:[%s3 + $0x2c] sm:$0xf]
        %v1010 = vld [vmem:[%s3 + $0x30] sm:$0xf]
        %v1011 = vld [vmem:[%s3 + $0x34] sm:$0xf]
        %v1012 = vld [vmem:[%s3 + $0x38] sm:$0xf]
        %v1013 = vld [vmem:[%s3 + $0x3c] sm:$0xf]
        %v1014 = vld [vmem:[%s5 + $0x2] sm:$0x1]
        %v1015 = vlaneseq
        %v1016 = vshrl.u32 %v1015, 7
        %v1017 = vsub.s32 0, %v1016
        %v1018 = vrot.slane %v1014, %v1017
        %v1035 = vunpack.c.l.b16 %v998
        %v1036 = vunpack.c.l.b16 %v999
        %v1037 = vunpack.c.l.b16 %v1000
        %v1038 = vunpack.c.l.b16 %v1001
        %v1039 = vunpack.c.l.b16 %v1002
        %v1040 = vunpack.c.l.b16 %v1003
        %v1041 = vunpack.c.l.b16 %v1004
        %v1042 = vunpack.c.l.b16 %v1005
        %v1043 = vunpack.c.l.b16 %v1006
        %v1044 = vunpack.c.l.b16 %v1007
        %v1045 = vunpack.c.l.b16 %v1008
        %v1046 = vunpack.c.l.b16 %v1009
        %v1047 = vunpack.c.l.b16 %v1010
        %v1048 = vunpack.c.l.b16 %v1011
        %v1049 = vunpack.c.l.b16 %v1012
        %v1050 = vunpack.c.l.b16 %v1013
        %v1051 = vpack.c.b16 %v1036, %v1035
        %v1052 = vpack.c.b16 %v1038, %v1037
        %v1053 = vpack.c.b16 %v1040, %v1039
        %v1054 = vpack.c.b16 %v1042, %v1041
        %v1055 = vpack.c.b16 %v1044, %v1043
        %v1056 = vpack.c.b16 %v1046, %v1045
        %v1057 = vpack.c.b16 %v1048, %v1047
        %v1058 = vpack.c.b16 %v1050, %v1049
        %1067 = vmatprep.subr.bf16.mxu0 0
        %1068 = vmatpush1.bf16.msra.mxu0 %v1051
        %1069 = vmatprep.subr.bf16.mxu0 0
        %1070 = vmatpush1.bf16.msra.mxu0 %v1052
        %1071 = vmatprep.subr.bf16.mxu0 0
        %1072 = vmatpush1.bf16.msra.mxu0 %v1053
        %1073 = vmatprep.subr.bf16.mxu0 0
        %1074 = vmatpush1.bf16.msra.mxu0 %v1054
        %1075 = vmatprep.subr.bf16.mxu0 0
        %1076 = vmatpush1.bf16.msra.mxu0 %v1055
        %1077 = vmatprep.subr.bf16.mxu0 0
        %1078 = vmatpush1.bf16.msra.mxu0 %v1056
        %1079 = vmatprep.subr.bf16.mxu0 0
        %1080 = vmatpush1.bf16.msra.mxu0 %v1057
        %1081 = vmatprep.subr.bf16.mxu0 0
        %1082 = vmatpush1.bf16.msra.mxu0 %v1058
        %1083 = vmatprep.subr.bf16.mxu0 0
        %1084 = vmatpush1.bf16.msra.mxu0 0
        %1085 = vmatprep.subr.bf16.mxu0 0
        %1086 = vmatpush1.bf16.msra.mxu0 0
        %1087 = vmatprep.subr.bf16.mxu0 0
        %1088 = vmatpush1.bf16.msra.mxu0 0
        %1089 = vmatprep.subr.bf16.mxu0 0
        %1090 = vmatpush1.bf16.msra.mxu0 0
        %1091 = vmatprep.subr.bf16.mxu0 0
        %1092 = vmatpush1.bf16.msra.mxu0 0
        %1093 = vmatprep.subr.bf16.mxu0 0
        %1094 = vmatpush1.bf16.msra.mxu0 0
        %1095 = vmatprep.subr.bf16.mxu0 0
        %1096 = vmatpush1.bf16.msra.mxu0 0
        %1097 = vmatprep.subr.bf16.mxu0 0
        %1098 = vmatpush1.bf16.msra.mxu0 0
        %1099 = vmatprep.mubr.bf16.mxu0 0
        %1100 = vmatmul.mubr.bf16.gmra.mrb[0].mxu0 %v982
        %v1101 = vpop.f32.mrb[0].mxu0
        %v1102 = vadd.f32 %v1018, %v1101
        %v1103 = vpop.f32.mrb[0].mxu0
        %v1104 = vpop.f32.mrb[0].mxu0
        %v1105 = vadd.f32 %v1018, %v1104
        %v1106 = vpop.f32.mrb[0].mxu0
        %1107 = vmatprep.mubr.bf16.mxu0 0
        %1108 = vmatmul.mubr.bf16.gmra.mrb[0].mxu0 %v983
        %v1109 = vpop.f32.mrb[0].mxu0
        %v1110 = vadd.f32 %v1018, %v1109
        %v1111 = vpop.f32.mrb[0].mxu0
        %v1112 = vpop.f32.mrb[0].mxu0
        %v1113 = vadd.f32 %v1018, %v1112
        %v1114 = vpop.f32.mrb[0].mxu0
        %1115 = vmatprep.mubr.bf16.mxu0 0
        %1116 = vmatmul.mubr.bf16.gmra.mrb[0].mxu0 %v984
        %v1117 = vpop.f32.mrb[0].mxu0
        %v1118 = vadd.f32 %v1018, %v1117
        %v1119 = vpop.f32.mrb[0].mxu0
        %v1120 = vpop.f32.mrb[0].mxu0
        %v1121 = vadd.f32 %v1018, %v1120
        %v1122 = vpop.f32.mrb[0].mxu0
        %1123 = vmatprep.mubr.bf16.mxu0 0
        %1124 = vmatmul.mubr.bf16.gmra.mrb[0].mxu0 %v985
        %v1125 = vpop.f32.mrb[0].mxu0
        %v1126 = vadd.f32 %v1018, %v1125
        %v1127 = vpop.f32.mrb[0].mxu0
        %v1128 = vpop.f32.mrb[0].mxu0
        %v1129 = vadd.f32 %v1018, %v1128
        %v1130 = vpop.f32.mrb[0].mxu0
        %1131 = vmatprep.mubr.bf16.mxu0 0
        %1132 = vmatmul.mubr.bf16.gmra.mrb[0].mxu0 %v986
        %v1133 = vpop.f32.mrb[0].mxu0
        %v1134 = vadd.f32 %v1018, %v1133
        %v1135 = vpop.f32.mrb[0].mxu0
        %v1136 = vpop.f32.mrb[0].mxu0
        %v1137 = vadd.f32 %v1018, %v1136
        %v1138 = vpop.f32.mrb[0].mxu0
        %1139 = vmatprep.mubr.bf16.mxu0 0
        %1140 = vmatmul.mubr.bf16.gmra.mrb[0].mxu0 %v987
        %v1141 = vpop.f32.mrb[0].mxu0
        %v1142 = vadd.f32 %v1018, %v1141
        %v1143 = vpop.f32.mrb[0].mxu0
        %v1144 = vpop.f32.mrb[0].mxu0
        %v1145 = vadd.f32 %v1018, %v1144
        %v1146 = vpop.f32.mrb[0].mxu0
        %1147 = vmatprep.mubr.bf16.mxu0 0
        %1148 = vmatmul.mubr.bf16.gmra.mrb[0].mxu0 %v988
        %v1149 = vpop.f32.mrb[0].mxu0
        %v1150 = vadd.f32 %v1018, %v1149
        %v1151 = vpop.f32.mrb[0].mxu0
        %v1152 = vpop.f32.mrb[0].mxu0
        %v1153 = vadd.f32 %v1018, %v1152
        %v1154 = vpop.f32.mrb[0].mxu0
        %1155 = vmatprep.mubr.bf16.mxu0 0
        %1156 = vmatmul.mubr.bf16.gmra.mrb[0].mxu0 %v989
        %v1157 = vpop.f32.mrb[0].mxu0
        %v1158 = vadd.f32 %v1018, %v1157
        %v1159 = vpop.f32.mrb[0].mxu0
        %v1160 = vpop.f32.mrb[0].mxu0
        %v1161 = vadd.f32 %v1018, %v1160
        %v1162 = vpop.f32.mrb[0].mxu0
        %1163 = vmatprep.mubr.bf16.mxu0 0
        %1164 = vmatmul.mubr.bf16.gmra.mrb[0].mxu0 %v990
        %v1165 = vpop.f32.mrb[0].mxu0
        %v1166 = vadd.f32 %v1018, %v1165
        %v1167 = vpop.f32.mrb[0].mxu0
        %v1168 = vpop.f32.mrb[0].mxu0
        %v1169 = vadd.f32 %v1018, %v1168
        %v1170 = vpop.f32.mrb[0].mxu0
        %1171 = vmatprep.mubr.bf16.mxu0 0
        %1172 = vmatmul.mubr.bf16.gmra.mrb[0].mxu0 %v991
        %v1173 = vpop.f32.mrb[0].mxu0
        %v1174 = vadd.f32 %v1018, %v1173
        %v1175 = vpop.f32.mrb[0].mxu0
        %v1176 = vpop.f32.mrb[0].mxu0
        %v1177 = vadd.f32 %v1018, %v1176
        %v1178 = vpop.f32.mrb[0].mxu0
        %1179 = vmatprep.mubr.bf16.mxu0 0
        %1180 = vmatmul.mubr.bf16.gmra.mrb[0].mxu0 %v992
        %v1181 = vpop.f32.mrb[0].mxu0
        %v1182 = vadd.f32 %v1018, %v1181
        %v1183 = vpop.f32.mrb[0].mxu0
        %v1184 = vpop.f32.mrb[0].mxu0
        %v1185 = vadd.f32 %v1018, %v1184
        %v1186 = vpop.f32.mrb[0].mxu0
        %1187 = vmatprep.mubr.bf16.mxu0 0
        %1188 = vmatmul.mubr.bf16.gmra.mrb[0].mxu0 %v993
        %v1189 = vpop.f32.mrb[0].mxu0
        %v1190 = vadd.f32 %v1018, %v1189
        %v1191 = vpop.f32.mrb[0].mxu0
        %v1192 = vpop.f32.mrb[0].mxu0
        %v1193 = vadd.f32 %v1018, %v1192
        %v1194 = vpop.f32.mrb[0].mxu0
        %1195 = vmatprep.mubr.bf16.mxu0 0
        %1196 = vmatmul.mubr.bf16.gmra.mrb[0].mxu0 %v994
        %v1197 = vpop.f32.mrb[0].mxu0
        %v1198 = vadd.f32 %v1018, %v1197
        %v1199 = vpop.f32.mrb[0].mxu0
        %v1200 = vpop.f32.mrb[0].mxu0
        %v1201 = vadd.f32 %v1018, %v1200
        %v1202 = vpop.f32.mrb[0].mxu0
        %1203 = vmatprep.mubr.bf16.mxu0 0
        %1204 = vmatmul.mubr.bf16.gmra.mrb[0].mxu0 %v995
        %v1205 = vpop.f32.mrb[0].mxu0
        %v1206 = vadd.f32 %v1018, %v1205
        %v1207 = vpop.f32.mrb[0].mxu0
        %v1208 = vpop.f32.mrb[0].mxu0
        %v1209 = vadd.f32 %v1018, %v1208
        %v1210 = vpop.f32.mrb[0].mxu0
        %1211 = vmatprep.mubr.bf16.mxu0 0
        %1212 = vmatmul.mubr.bf16.gmra.mrb[0].mxu0 %v996
        %v1213 = vpop.f32.mrb[0].mxu0
        %v1214 = vadd.f32 %v1018, %v1213
        %v1215 = vpop.f32.mrb[0].mxu0
        %v1216 = vpop.f32.mrb[0].mxu0
        %v1217 = vadd.f32 %v1018, %v1216
        %v1218 = vpop.f32.mrb[0].mxu0
        %1219 = vmatprep.mubr.bf16.mxu0 0
        %1220 = vmatmul.mubr.bf16.gmra.mrb[0].mxu0 %v997
        %v1221 = vpop.f32.mrb[0].mxu0
        %v1222 = vadd.f32 %v1018, %v1221
        %v1223 = vpop.f32.mrb[0].mxu0
        %v1224 = vpop.f32.mrb[0].mxu0
        %v1225 = vadd.f32 %v1018, %v1224
        %v1226 = vpop.f32.mrb[0].mxu0
        %1227 = vdwg.mxu0
        %v1228 = vmax.f32 %v1102, 0.0
        %v1229 = vmax.f32 %v1105, 0.0
        %v1230 = vmax.f32 %v1110, 0.0
        %v1231 = vmax.f32 %v1113, 0.0
        %v1232 = vmax.f32 %v1118, 0.0
        %v1233 = vmax.f32 %v1121, 0.0
        %v1234 = vmax.f32 %v1126, 0.0
        %v1235 = vmax.f32 %v1129, 0.0
        %v1236 = vmax.f32 %v1134, 0.0
        %v1237 = vmax.f32 %v1137, 0.0
        %v1238 = vmax.f32 %v1142, 0.0
        %v1239 = vmax.f32 %v1145, 0.0
        %v1240 = vmax.f32 %v1150, 0.0
        %v1241 = vmax.f32 %v1153, 0.0
        %v1242 = vmax.f32 %v1158, 0.0
        %v1243 = vmax.f32 %v1161, 0.0
        %v1244 = vmax.f32 %v1166, 0.0
        %v1245 = vmax.f32 %v1169, 0.0
        %v1246 = vmax.f32 %v1174, 0.0
        %v1247 = vmax.f32 %v1177, 0.0
        %v1248 = vmax.f32 %v1182, 0.0
        %v1249 = vmax.f32 %v1185, 0.0
        %v1250 = vmax.f32 %v1190, 0.0
        %v1251 = vmax.f32 %v1193, 0.0
        %v1252 = vmax.f32 %v1198, 0.0
        %v1253 = vmax.f32 %v1201, 0.0
        %v1254 = vmax.f32 %v1206, 0.0
        %v1255 = vmax.f32 %v1209, 0.0
        %v1256 = vmax.f32 %v1214, 0.0
        %v1257 = vmax.f32 %v1217, 0.0
        %v1258 = vmax.f32 %v1222, 0.0
        %v1259 = vmax.f32 %v1225, 0.0
        %v1260 = vpack.c.bf16 %v1229, %v1228
        %v1261 = vpack.c.bf16 %v1231, %v1230
        %v1262 = vpack.c.bf16 %v1233, %v1232
        %v1263 = vpack.c.bf16 %v1235, %v1234
        %v1264 = vpack.c.bf16 %v1237, %v1236
        %v1265 = vpack.c.bf16 %v1239, %v1238
        %v1266 = vpack.c.bf16 %v1241, %v1240
        %v1267 = vpack.c.bf16 %v1243, %v1242
        %v1268 = vpack.c.bf16 %v1245, %v1244
        %v1269 = vpack.c.bf16 %v1247, %v1246
        %v1270 = vpack.c.bf16 %v1249, %v1248
        %v1271 = vpack.c.bf16 %v1251, %v1250
        %v1272 = vpack.c.bf16 %v1253, %v1252
        %v1273 = vpack.c.bf16 %v1255, %v1254
        %v1274 = vpack.c.bf16 %v1257, %v1256
        %v1275 = vpack.c.bf16 %v1259, %v1258
        %v1276 = vld [vmem:[%s4] sm:$0xf]
        %v1277 = vld [vmem:[%s4 + $0x4] sm:$0xf]
        %v1278 = vld [vmem:[%s4 + $0x8] sm:$0xf]
        %v1279 = vld [vmem:[%s4 + $0xc] sm:$0xf]
        %v1280 = vld [vmem:[%s4 + $0x10] sm:$0xf]
        %v1281 = vld [vmem:[%s4 + $0x14] sm:$0xf]
        %v1282 = vld [vmem:[%s4 + $0x18] sm:$0xf]
        %v1283 = vld [vmem:[%s4 + $0x1c] sm:$0xf]
        %v1284 = vld [vmem:[%s4 + $0x20] sm:$0xf]
        %v1285 = vld [vmem:[%s4 + $0x24] sm:$0xf]
        %v1286 = vld [vmem:[%s4 + $0x28] sm:$0xf]
        %v1287 = vld [vmem:[%s4 + $0x2c] sm:$0xf]
        %v1288 = vld [vmem:[%s4 + $0x30] sm:$0xf]
        %v1289 = vld [vmem:[%s4 + $0x34] sm:$0xf]
        %v1290 = vld [vmem:[%s4 + $0x38] sm:$0xf]
        %v1291 = vld [vmem:[%s4 + $0x3c] sm:$0xf]
        %v1292 = vld [vmem:[%s5 + $0x3] sm:$0x1]
        %v1293 = vlaneseq
        %v1294 = vshrl.u32 %v1293, 7
        %v1295 = vsub.s32 0, %v1294
        %v1296 = vrot.slane %v1292, %v1295
        %v1313 = vunpack.c.l.b16 %v1276
        %v1314 = vunpack.c.l.b16 %v1277
        %v1315 = vunpack.c.l.b16 %v1278
        %v1316 = vunpack.c.l.b16 %v1279
        %v1317 = vunpack.c.l.b16 %v1280
        %v1318 = vunpack.c.l.b16 %v1281
        %v1319 = vunpack.c.l.b16 %v1282
        %v1320 = vunpack.c.l.b16 %v1283
        %v1321 = vunpack.c.l.b16 %v1284
        %v1322 = vunpack.c.l.b16 %v1285
        %v1323 = vunpack.c.l.b16 %v1286
        %v1324 = vunpack.c.l.b16 %v1287
        %v1325 = vunpack.c.l.b16 %v1288
        %v1326 = vunpack.c.l.b16 %v1289
        %v1327 = vunpack.c.l.b16 %v1290
        %v1328 = vunpack.c.l.b16 %v1291
        %v1329 = vpack.c.b16 %v1314, %v1313
        %v1330 = vpack.c.b16 %v1316, %v1315
        %v1331 = vpack.c.b16 %v1318, %v1317
        %v1332 = vpack.c.b16 %v1320, %v1319
        %v1333 = vpack.c.b16 %v1322, %v1321
        %v1334 = vpack.c.b16 %v1324, %v1323
        %v1335 = vpack.c.b16 %v1326, %v1325
        %v1336 = vpack.c.b16 %v1328, %v1327
        %1345 = vmatprep.subr.bf16.mxu0 0
        %1346 = vmatpush1.bf16.msra.mxu0 %v1329
        %1347 = vmatprep.subr.bf16.mxu0 0
        %1348 = vmatpush1.bf16.msra.mxu0 %v1330
        %1349 = vmatprep.subr.bf16.mxu0 0
        %1350 = vmatpush1.bf16.msra.mxu0 %v1331
        %1351 = vmatprep.subr.bf16.mxu0 0
        %1352 = vmatpush1.bf16.msra.mxu0 %v1332
        %1353 = vmatprep.subr.bf16.mxu0 0
        %1354 = vmatpush1.bf16.msra.mxu0 %v1333
        %1355 = vmatprep.subr.bf16.mxu0 0
        %1356 = vmatpush1.bf16.msra.mxu0 %v1334
        %1357 = vmatprep.subr.bf16.mxu0 0
        %1358 = vmatpush1.bf16.msra.mxu0 %v1335
        %1359 = vmatprep.subr.bf16.mxu0 0
        %1360 = vmatpush1.bf16.msra.mxu0 %v1336
        %1361 = vmatprep.subr.bf16.mxu0 0
        %1362 = vmatpush1.bf16.msra.mxu0 0
        %1363 = vmatprep.subr.bf16.mxu0 0
        %1364 = vmatpush1.bf16.msra.mxu0 0
        %1365 = vmatprep.subr.bf16.mxu0 0
        %1366 = vmatpush1.bf16.msra.mxu0 0
        %1367 = vmatprep.subr.bf16.mxu0 0
        %1368 = vmatpush1.bf16.msra.mxu0 0
        %1369 = vmatprep.subr.bf16.mxu0 0
        %1370 = vmatpush1.bf16.msra.mxu0 0
        %1371 = vmatprep.subr.bf16.mxu0 0
        %1372 = vmatpush1.bf16.msra.mxu0 0
        %1373 = vmatprep.subr.bf16.mxu0 0
        %1374 = vmatpush1.bf16.msra.mxu0 0
        %1375 = vmatprep.subr.bf16.mxu0 0
        %1376 = vmatpush1.bf16.msra.mxu0 0
        %1377 = vmatprep.mubr.bf16.mxu0 0
        %1378 = vmatmul.mubr.bf16.gmra.mrb[0].mxu0 %v1260
        %v1379 = vpop.f32.mrb[0].mxu0
        %v1380 = vadd.f32 %v1296, %v1379
        %v1381 = vpop.f32.mrb[0].mxu0
        %v1382 = vpop.f32.mrb[0].mxu0
        %v1383 = vadd.f32 %v1296, %v1382
        %v1384 = vpop.f32.mrb[0].mxu0
        %1385 = vmatprep.mubr.bf16.mxu0 0
        %1386 = vmatmul.mubr.bf16.gmra.mrb[0].mxu0 %v1261
        %v1387 = vpop.f32.mrb[0].mxu0
        %v1388 = vadd.f32 %v1296, %v1387
        %v1389 = vpop.f32.mrb[0].mxu0
        %v1390 = vpop.f32.mrb[0].mxu0
        %v1391 = vadd.f32 %v1296, %v1390
        %v1392 = vpop.f32.mrb[0].mxu0
        %1393 = vmatprep.mubr.bf16.mxu0 0
        %1394 = vmatmul.mubr.bf16.gmra.mrb[0].mxu0 %v1262
        %v1395 = vpop.f32.mrb[0].mxu0
        %v1396 = vadd.f32 %v1296, %v1395
        %v1397 = vpop.f32.mrb[0].mxu0
        %v1398 = vpop.f32.mrb[0].mxu0
        %v1399 = vadd.f32 %v1296, %v1398
        %v1400 = vpop.f32.mrb[0].mxu0
        %1401 = vmatprep.mubr.bf16.mxu0 0
        %1402 = vmatmul.mubr.bf16.gmra.mrb[0].mxu0 %v1263
        %v1403 = vpop.f32.mrb[0].mxu0
        %v1404 = vadd.f32 %v1296, %v1403
        %v1405 = vpop.f32.mrb[0].mxu0
        %v1406 = vpop.f32.mrb[0].mxu0
        %v1407 = vadd.f32 %v1296, %v1406
        %v1408 = vpop.f32.mrb[0].mxu0
        %1409 = vmatprep.mubr.bf16.mxu0 0
        %1410 = vmatmul.mubr.bf16.gmra.mrb[0].mxu0 %v1264
        %v1411 = vpop.f32.mrb[0].mxu0
        %v1412 = vadd.f32 %v1296, %v1411
        %v1413 = vpop.f32.mrb[0].mxu0
        %v1414 = vpop.f32.mrb[0].mxu0
        %v1415 = vadd.f32 %v1296, %v1414
        %v1416 = vpop.f32.mrb[0].mxu0
        %1417 = vmatprep.mubr.bf16.mxu0 0
        %1418 = vmatmul.mubr.bf16.gmra.mrb[0].mxu0 %v1265
        %v1419 = vpop.f32.mrb[0].mxu0
        %v1420 = vadd.f32 %v1296, %v1419
        %v1421 = vpop.f32.mrb[0].mxu0
        %v1422 = vpop.f32.mrb[0].mxu0
        %v1423 = vadd.f32 %v1296, %v1422
        %v1424 = vpop.f32.mrb[0].mxu0
        %1425 = vmatprep.mubr.bf16.mxu0 0
        %1426 = vmatmul.mubr.bf16.gmra.mrb[0].mxu0 %v1266
        %v1427 = vpop.f32.mrb[0].mxu0
        %v1428 = vadd.f32 %v1296, %v1427
        %v1429 = vpop.f32.mrb[0].mxu0
        %v1430 = vpop.f32.mrb[0].mxu0
        %v1431 = vadd.f32 %v1296, %v1430
        %v1432 = vpop.f32.mrb[0].mxu0
        %1433 = vmatprep.mubr.bf16.mxu0 0
        %1434 = vmatmul.mubr.bf16.gmra.mrb[0].mxu0 %v1267
        %v1435 = vpop.f32.mrb[0].mxu0
        %v1436 = vadd.f32 %v1296, %v1435
        %v1437 = vpop.f32.mrb[0].mxu0
        %v1438 = vpop.f32.mrb[0].mxu0
        %v1439 = vadd.f32 %v1296, %v1438
        %v1440 = vpop.f32.mrb[0].mxu0
        %1441 = vmatprep.mubr.bf16.mxu0 0
        %1442 = vmatmul.mubr.bf16.gmra.mrb[0].mxu0 %v1268
        %v1443 = vpop.f32.mrb[0].mxu0
        %v1444 = vadd.f32 %v1296, %v1443
        %v1445 = vpop.f32.mrb[0].mxu0
        %v1446 = vpop.f32.mrb[0].mxu0
        %v1447 = vadd.f32 %v1296, %v1446
        %v1448 = vpop.f32.mrb[0].mxu0
        %1449 = vmatprep.mubr.bf16.mxu0 0
        %1450 = vmatmul.mubr.bf16.gmra.mrb[0].mxu0 %v1269
        %v1451 = vpop.f32.mrb[0].mxu0
        %v1452 = vadd.f32 %v1296, %v1451
        %v1453 = vpop.f32.mrb[0].mxu0
        %v1454 = vpop.f32.mrb[0].mxu0
        %v1455 = vadd.f32 %v1296, %v1454
        %v1456 = vpop.f32.mrb[0].mxu0
        %1457 = vmatprep.mubr.bf16.mxu0 0
        %1458 = vmatmul.mubr.bf16.gmra.mrb[0].mxu0 %v1270
        %v1459 = vpop.f32.mrb[0].mxu0
        %v1460 = vadd.f32 %v1296, %v1459
        %v1461 = vpop.f32.mrb[0].mxu0
        %v1462 = vpop.f32.mrb[0].mxu0
        %v1463 = vadd.f32 %v1296, %v1462
        %v1464 = vpop.f32.mrb[0].mxu0
        %1465 = vmatprep.mubr.bf16.mxu0 0
        %1466 = vmatmul.mubr.bf16.gmra.mrb[0].mxu0 %v1271
        %v1467 = vpop.f32.mrb[0].mxu0
        %v1468 = vadd.f32 %v1296, %v1467
        %v1469 = vpop.f32.mrb[0].mxu0
        %v1470 = vpop.f32.mrb[0].mxu0
        %v1471 = vadd.f32 %v1296, %v1470
        %v1472 = vpop.f32.mrb[0].mxu0
        %1473 = vmatprep.mubr.bf16.mxu0 0
        %1474 = vmatmul.mubr.bf16.gmra.mrb[0].mxu0 %v1272
        %v1475 = vpop.f32.mrb[0].mxu0
        %v1476 = vadd.f32 %v1296, %v1475
        %v1477 = vpop.f32.mrb[0].mxu0
        %v1478 = vpop.f32.mrb[0].mxu0
        %v1479 = vadd.f32 %v1296, %v1478
        %v1480 = vpop.f32.mrb[0].mxu0
        %1481 = vmatprep.mubr.bf16.mxu0 0
        %1482 = vmatmul.mubr.bf16.gmra.mrb[0].mxu0 %v1273
        %v1483 = vpop.f32.mrb[0].mxu0
        %v1484 = vadd.f32 %v1296, %v1483
        %v1485 = vpop.f32.mrb[0].mxu0
        %v1486 = vpop.f32.mrb[0].mxu0
        %v1487 = vadd.f32 %v1296, %v1486
        %v1488 = vpop.f32.mrb[0].mxu0
        %1489 = vmatprep.mubr.bf16.mxu0 0
        %1490 = vmatmul.mubr.bf16.gmra.mrb[0].mxu0 %v1274
        %v1491 = vpop.f32.mrb[0].mxu0
        %v1492 = vadd.f32 %v1296, %v1491
        %v1493 = vpop.f32.mrb[0].mxu0
        %v1494 = vpop.f32.mrb[0].mxu0
        %v1495 = vadd.f32 %v1296, %v1494
        %v1496 = vpop.f32.mrb[0].mxu0
        %1497 = vmatprep.mubr.bf16.mxu0 0
        %1498 = vmatmul.mubr.bf16.gmra.mrb[0].mxu0 %v1275
        %v1499 = vpop.f32.mrb[0].mxu0
        %v1500 = vadd.f32 %v1296, %v1499
        %v1501 = vpop.f32.mrb[0].mxu0
        %v1502 = vpop.f32.mrb[0].mxu0
        %v1503 = vadd.f32 %v1296, %v1502
        %v1504 = vpop.f32.mrb[0].mxu0
        %1505 = vdwg.mxu0
        %v1506 = vpack.c.bf16 %v1383, %v1380
        %v1507 = vpack.c.bf16 %v1391, %v1388
        %v1508 = vpack.c.bf16 %v1399, %v1396
        %v1509 = vpack.c.bf16 %v1407, %v1404
        %v1510 = vpack.c.bf16 %v1415, %v1412
        %v1511 = vpack.c.bf16 %v1423, %v1420
        %v1512 = vpack.c.bf16 %v1431, %v1428
        %v1513 = vpack.c.bf16 %v1439, %v1436
        %v1514 = vpack.c.bf16 %v1447, %v1444
        %v1515 = vpack.c.bf16 %v1455, %v1452
        %v1516 = vpack.c.bf16 %v1463, %v1460
        %v1517 = vpack.c.bf16 %v1471, %v1468
        %v1518 = vpack.c.bf16 %v1479, %v1476
        %v1519 = vpack.c.bf16 %v1487, %v1484
        %v1520 = vpack.c.bf16 %v1495, %v1492
        %v1521 = vpack.c.bf16 %v1503, %v1500
        %v1538 = vunpack.c.l.b16 %v1506
        %v1539 = vunpack.c.h.b16 %v1506
        %v1540 = vunpack.c.l.b16 %v1507
        %v1541 = vunpack.c.h.b16 %v1507
        %v1542 = vunpack.c.l.b16 %v1508
        %v1543 = vunpack.c.h.b16 %v1508
        %v1544 = vunpack.c.l.b16 %v1509
        %v1545 = vunpack.c.h.b16 %v1509
        %v1546 = vunpack.c.l.b16 %v1510
        %v1547 = vunpack.c.h.b16 %v1510
        %v1548 = vunpack.c.l.b16 %v1511
        %v1549 = vunpack.c.h.b16 %v1511
        %v1550 = vunpack.c.l.b16 %v1512
        %v1551 = vunpack.c.h.b16 %v1512
        %v1552 = vunpack.c.l.b16 %v1513
        %v1553 = vunpack.c.h.b16 %v1513
        %v1554 = vunpack.c.l.b16 %v1514
        %v1555 = vunpack.c.h.b16 %v1514
        %v1556 = vunpack.c.l.b16 %v1515
        %v1557 = vunpack.c.h.b16 %v1515
        %v1558 = vunpack.c.l.b16 %v1516
        %v1559 = vunpack.c.h.b16 %v1516
        %v1560 = vunpack.c.l.b16 %v1517
        %v1561 = vunpack.c.h.b16 %v1517
        %v1562 = vunpack.c.l.b16 %v1518
        %v1563 = vunpack.c.h.b16 %v1518
        %v1564 = vunpack.c.l.b16 %v1519
        %v1565 = vunpack.c.h.b16 %v1519
        %v1566 = vunpack.c.l.b16 %v1520
        %v1567 = vunpack.c.h.b16 %v1520
        %v1568 = vunpack.c.l.b16 %v1521
        %v1569 = vunpack.c.h.b16 %v1521
        %v1570 = vpack.c.b16 %v1538, %v1538
        %v1571 = vpack.c.b16 %v1539, %v1539
        %v1572 = vpack.c.b16 %v1540, %v1540
        %v1573 = vpack.c.b16 %v1541, %v1541
        %v1574 = vpack.c.b16 %v1542, %v1542
        %v1575 = vpack.c.b16 %v1543, %v1543
        %v1576 = vpack.c.b16 %v1544, %v1544
        %v1577 = vpack.c.b16 %v1545, %v1545
        %v1578 = vpack.c.b16 %v1546, %v1546
        %v1579 = vpack.c.b16 %v1547, %v1547
        %v1580 = vpack.c.b16 %v1548, %v1548
        %v1581 = vpack.c.b16 %v1549, %v1549
        %v1582 = vpack.c.b16 %v1550, %v1550
        %v1583 = vpack.c.b16 %v1551, %v1551
        %v1584 = vpack.c.b16 %v1552, %v1552
        %v1585 = vpack.c.b16 %v1553, %v1553
        %v1586 = vpack.c.b16 %v1554, %v1554
        %v1587 = vpack.c.b16 %v1555, %v1555
        %v1588 = vpack.c.b16 %v1556, %v1556
        %v1589 = vpack.c.b16 %v1557, %v1557
        %v1590 = vpack.c.b16 %v1558, %v1558
        %v1591 = vpack.c.b16 %v1559, %v1559
        %v1592 = vpack.c.b16 %v1560, %v1560
        %v1593 = vpack.c.b16 %v1561, %v1561
        %v1594 = vpack.c.b16 %v1562, %v1562
        %v1595 = vpack.c.b16 %v1563, %v1563
        %v1596 = vpack.c.b16 %v1564, %v1564
        %v1597 = vpack.c.b16 %v1565, %v1565
        %v1598 = vpack.c.b16 %v1566, %v1566
        %v1599 = vpack.c.b16 %v1567, %v1567
        %v1600 = vpack.c.b16 %v1568, %v1568
        %v1601 = vpack.c.b16 %v1569, %v1569
        %1634 = vst [vmem:[%s258] sm:$0xf] %v1570
        %1635 = vst [vmem:[%s258 + $0x4] sm:$0xf] %v1571
        %1636 = vst [vmem:[%s258 + $0x8] sm:$0xf] %v1572
        %1637 = vst [vmem:[%s258 + $0xc] sm:$0xf] %v1573
        %1638 = vst [vmem:[%s258 + $0x10] sm:$0xf] %v1574
        %1639 = vst [vmem:[%s258 + $0x14] sm:$0xf] %v1575
        %1640 = vst [vmem:[%s258 + $0x18] sm:$0xf] %v1576
        %1641 = vst [vmem:[%s258 + $0x1c] sm:$0xf] %v1577
        %1642 = vst [vmem:[%s258 + $0x20] sm:$0xf] %v1578
        %1643 = vst [vmem:[%s258 + $0x24] sm:$0xf] %v1579
        %1644 = vst [vmem:[%s258 + $0x28] sm:$0xf] %v1580
        %1645 = vst [vmem:[%s258 + $0x2c] sm:$0xf] %v1581
        %1646 = vst [vmem:[%s258 + $0x30] sm:$0xf] %v1582
        %1647 = vst [vmem:[%s258 + $0x34] sm:$0xf] %v1583
        %1648 = vst [vmem:[%s258 + $0x38] sm:$0xf] %v1584
        %1649 = vst [vmem:[%s258 + $0x3c] sm:$0xf] %v1585
        %1650 = vst [vmem:[%s258 + $0x40] sm:$0xf] %v1586
        %1651 = vst [vmem:[%s258 + $0x44] sm:$0xf] %v1587
        %1652 = vst [vmem:[%s258 + $0x48] sm:$0xf] %v1588
        %1653 = vst [vmem:[%s258 + $0x4c] sm:$0xf] %v1589
        %1654 = vst [vmem:[%s258 + $0x50] sm:$0xf] %v1590
        %1655 = vst [vmem:[%s258 + $0x54] sm:$0xf] %v1591
        %1656 = vst [vmem:[%s258 + $0x58] sm:$0xf] %v1592
        %1657 = vst [vmem:[%s258 + $0x5c] sm:$0xf] %v1593
        %1658 = vst [vmem:[%s258 + $0x60] sm:$0xf] %v1594
        %1659 = vst [vmem:[%s258 + $0x64] sm:$0xf] %v1595
        %1660 = vst [vmem:[%s258 + $0x68] sm:$0xf] %v1596
        %1661 = vst [vmem:[%s258 + $0x6c] sm:$0xf] %v1597
        %1662 = vst [vmem:[%s258 + $0x70] sm:$0xf] %v1598
        %1663 = vst [vmem:[%s258 + $0x74] sm:$0xf] %v1599
        %1664 = vst [vmem:[%s258 + $0x78] sm:$0xf] %v1600
        %1665 = vst [vmem:[%s258 + $0x7c] sm:$0xf] %v1601
        %s1666 = sand.u32 %s156, 1
        %s1667 = sand.u32 %s156, 1
        %s1668 = smul.addr %s1667, 128
        %s1669 = scalar_lea.vmem [#allocation2], %s1668
        // Predicated region
        $region45: #{minigrid_mlp_target_embedding_forward.1} parent=43 // pred_check
          %p1670 = pneg %p166
        $region46: #{minigrid_mlp_target_embedding_forward.1} parent=43 // pred_check_branch
          %1672 = sbr.rel (%p1670) target = $region48
        $region47: #{minigrid_mlp_target_embedding_forward.1} parent=43 // pred_region
          %s1673 = smul.u32 32, %s17
          %s1674 = ssub.s32 125, %s1673
          %p1675 = scmp.lt.s32.totalorder %s1674, 32
          %s1676 = scalar_select %p1675, %s1674, 32
          %s1677 = smul.u32 64, %s1676
          %p1678 = scmp.ne.s32.totalorder 0, %s1677
          %s1679 = smul.addr %s1673, 4
          %s1680 = scalar_lea.vmem %s6, %s1679
          // Predicated region
          $region49: #{minigrid_mlp_target_embedding_forward.1} parent=47 // pred_check
            %p1681 = pneg %p1678
          $region50: #{minigrid_mlp_target_embedding_forward.1} parent=47 // pred_check_branch
            %1683 = sbr.rel (%p1681) target = $region52
          $region51: #{minigrid_mlp_target_embedding_forward.1} parent=47 // pred_region
            // Predicated region
            $region53: #{minigrid_mlp_target_embedding_forward.1} parent=51 // pred_check
              _
            $region54: #{minigrid_mlp_target_embedding_forward.1} parent=51 // pred_check_branch
              %1685 = sbr.rel target = $region56
            $region55: #{minigrid_mlp_target_embedding_forward.1} parent=51 // pred_region
              // Predicated region
              $region75: #{minigrid_mlp_target_embedding_forward.1} parent=55 // pred_check
                _
              $region76: #{minigrid_mlp_target_embedding_forward.1} parent=55 // pred_check_branch
                %1796 = sbr.rel (0) target = $region78
              $region77: #{minigrid_mlp_target_embedding_forward.1} parent=55 // pred_region
                %s1798 = sshrl.u32 %s1676, 5
                // While loop
                $region79: #{minigrid_mlp_target_embedding_forward.1} parent=77 // loop_pre_header
                  _
                $region80: #{minigrid_mlp_target_embedding_forward.1} parent=77 // loop_header
                  %s1800 = sphi 0, %s1802
                  %p1801 = scmp.ge.s32.totalorder %s1800, %s1798
                  %s1805 = sphi 0, %s1874
                  %s1806 = sphi %s1669, %s1877
                  %s1807 = sphi %s1680, %s1878
                $region81: #{minigrid_mlp_target_embedding_forward.1} parent=77 // loop_header_branch
                  %1804 = sbr.rel (%p1801) target = $region85
                $region82: #{minigrid_mlp_target_embedding_forward.1} parent=77 // loop_body
                  %v1808 = vld [vmem:[%s1806] sm:$0xf]
                  %1809 = vst [vmem:[%s1807] sm:$0xf] %v1808
                  %v1810 = vld [vmem:[%s1806 + $0x4] sm:$0xf]
                  %1811 = vst [vmem:[%s1807 + $0x4] sm:$0xf] %v1810
                  %v1812 = vld [vmem:[%s1806 + $0x8] sm:$0xf]
                  %1813 = vst [vmem:[%s1807 + $0x8] sm:$0xf] %v1812
                  %v1814 = vld [vmem:[%s1806 + $0xc] sm:$0xf]
                  %1815 = vst [vmem:[%s1807 + $0xc] sm:$0xf] %v1814
                  %v1816 = vld [vmem:[%s1806 + $0x10] sm:$0xf]
                  %1817 = vst [vmem:[%s1807 + $0x10] sm:$0xf] %v1816
                  %v1818 = vld [vmem:[%s1806 + $0x14] sm:$0xf]
                  %1819 = vst [vmem:[%s1807 + $0x14] sm:$0xf] %v1818
                  %v1820 = vld [vmem:[%s1806 + $0x18] sm:$0xf]
                  %1821 = vst [vmem:[%s1807 + $0x18] sm:$0xf] %v1820
                  %v1822 = vld [vmem:[%s1806 + $0x1c] sm:$0xf]
                  %1823 = vst [vmem:[%s1807 + $0x1c] sm:$0xf] %v1822
                  %v1824 = vld [vmem:[%s1806 + $0x20] sm:$0xf]
                  %1825 = vst [vmem:[%s1807 + $0x20] sm:$0xf] %v1824
                  %v1826 = vld [vmem:[%s1806 + $0x24] sm:$0xf]
                  %1827 = vst [vmem:[%s1807 + $0x24] sm:$0xf] %v1826
                  %v1828 = vld [vmem:[%s1806 + $0x28] sm:$0xf]
                  %1829 = vst [vmem:[%s1807 + $0x28] sm:$0xf] %v1828
                  %v1830 = vld [vmem:[%s1806 + $0x2c] sm:$0xf]
                  %1831 = vst [vmem:[%s1807 + $0x2c] sm:$0xf] %v1830
                  %v1832 = vld [vmem:[%s1806 + $0x30] sm:$0xf]
                  %1833 = vst [vmem:[%s1807 + $0x30] sm:$0xf] %v1832
                  %v1834 = vld [vmem:[%s1806 + $0x34] sm:$0xf]
                  %1835 = vst [vmem:[%s1807 + $0x34] sm:$0xf] %v1834
                  %v1836 = vld [vmem:[%s1806 + $0x38] sm:$0xf]
                  %1837 = vst [vmem:[%s1807 + $0x38] sm:$0xf] %v1836
                  %v1838 = vld [vmem:[%s1806 + $0x3c] sm:$0xf]
                  %1839 = vst [vmem:[%s1807 + $0x3c] sm:$0xf] %v1838
                  %v1840 = vld [vmem:[%s1806 + $0x40] sm:$0xf]
                  %1841 = vst [vmem:[%s1807 + $0x40] sm:$0xf] %v1840
                  %v1842 = vld [vmem:[%s1806 + $0x44] sm:$0xf]
                  %1843 = vst [vmem:[%s1807 + $0x44] sm:$0xf] %v1842
                  %v1844 = vld [vmem:[%s1806 + $0x48] sm:$0xf]
                  %1845 = vst [vmem:[%s1807 + $0x48] sm:$0xf] %v1844
                  %v1846 = vld [vmem:[%s1806 + $0x4c] sm:$0xf]
                  %1847 = vst [vmem:[%s1807 + $0x4c] sm:$0xf] %v1846
                  %v1848 = vld [vmem:[%s1806 + $0x50] sm:$0xf]
                  %1849 = vst [vmem:[%s1807 + $0x50] sm:$0xf] %v1848
                  %v1850 = vld [vmem:[%s1806 + $0x54] sm:$0xf]
                  %1851 = vst [vmem:[%s1807 + $0x54] sm:$0xf] %v1850
                  %v1852 = vld [vmem:[%s1806 + $0x58] sm:$0xf]
                  %1853 = vst [vmem:[%s1807 + $0x58] sm:$0xf] %v1852
                  %v1854 = vld [vmem:[%s1806 + $0x5c] sm:$0xf]
                  %1855 = vst [vmem:[%s1807 + $0x5c] sm:$0xf] %v1854
                  %v1856 = vld [vmem:[%s1806 + $0x60] sm:$0xf]
                  %1857 = vst [vmem:[%s1807 + $0x60] sm:$0xf] %v1856
                  %v1858 = vld [vmem:[%s1806 + $0x64] sm:$0xf]
                  %1859 = vst [vmem:[%s1807 + $0x64] sm:$0xf] %v1858
                  %v1860 = vld [vmem:[%s1806 + $0x68] sm:$0xf]
                  %1861 = vst [vmem:[%s1807 + $0x68] sm:$0xf] %v1860
                  %v1862 = vld [vmem:[%s1806 + $0x6c] sm:$0xf]
                  %1863 = vst [vmem:[%s1807 + $0x6c] sm:$0xf] %v1862
                  %v1864 = vld [vmem:[%s1806 + $0x70] sm:$0xf]
                  %1865 = vst [vmem:[%s1807 + $0x70] sm:$0xf] %v1864
                  %v1866 = vld [vmem:[%s1806 + $0x74] sm:$0xf]
                  %1867 = vst [vmem:[%s1807 + $0x74] sm:$0xf] %v1866
                  %v1868 = vld [vmem:[%s1806 + $0x78] sm:$0xf]
                  %1869 = vst [vmem:[%s1807 + $0x78] sm:$0xf] %v1868
                  %v1870 = vld [vmem:[%s1806 + $0x7c] sm:$0xf]
                  %1871 = vst [vmem:[%s1807 + $0x7c] sm:$0xf] %v1870
                  %s1872 = sadd.s32 1, %s1805
                  %p1873 = scmp.ge.s32.totalorder %s1872, %s1798
                  %s1874 = scalar_select %p1873, 0, %s1872
                  %s1875 = smul.u32 %s1874, 128
                  %s1876 = smul.u32 %s1874, 128
                  %s1877 = scalar_lea.vmem %s1669, %s1875 [#allocation2]
                  %s1878 = scalar_lea.vmem %s1680, %s1876
                $region83: #{minigrid_mlp_target_embedding_forward.1} parent=77 // loop_footer
                  %s1802 = sadd.s32 %s1800, 1
                $region84: #{minigrid_mlp_target_embedding_forward.1} parent=77 // loop_footer_branch
                  %1799 = sbr.rel target = $region80
                $region85: #{minigrid_mlp_target_embedding_forward.1} parent=77 // loop_exit
                  _
                %s1879 = sshrl.u32 %s1676, 5
                %s1880 = sand.u32 %s1676, 31
                %s1881 = smul.u32 %s1879, 32
                %s1882 = smul.u32 4, %s1881
                %s1883 = scalar_lea.vmem %s1669, %s1882 [#allocation2]
                %s1884 = smul.u32 4, %s1881
                %s1885 = scalar_lea.vmem %s1680, %s1884
                // While loop
                $region86: #{minigrid_mlp_target_embedding_forward.1} parent=77 // loop_pre_header
                  _
                $region87: #{minigrid_mlp_target_embedding_forward.1} parent=77 // loop_header
                  %s1887 = sphi 0, %s1889
                  %p1888 = scmp.ge.s32.totalorder %s1887, %s1880
                  %s1892 = sphi 0, %s1899
                  %s1893 = sphi %s1883, %s1902
                  %s1894 = sphi %s1885, %s1903
                $region88: #{minigrid_mlp_target_embedding_forward.1} parent=77 // loop_header_branch
                  %1891 = sbr.rel (%p1888) target = $region92
                $region89: #{minigrid_mlp_target_embedding_forward.1} parent=77 // loop_body
                  %v1895 = vld [vmem:[%s1893] sm:$0xf]
                  %1896 = vst [vmem:[%s1894] sm:$0xf] %v1895
                  %s1897 = sadd.s32 1, %s1892
                  %p1898 = scmp.ge.s32.totalorder %s1897, %s1880
                  %s1899 = scalar_select %p1898, 0, %s1897
                  %s1900 = smul.u32 %s1899, 4
                  %s1901 = smul.u32 %s1899, 4
                  %s1902 = scalar_lea.vmem %s1883, %s1900 [#allocation2]
                  %s1903 = scalar_lea.vmem %s1885, %s1901
                $region90: #{minigrid_mlp_target_embedding_forward.1} parent=77 // loop_footer
                  %s1889 = sadd.s32 %s1887, 1
                $region91: #{minigrid_mlp_target_embedding_forward.1} parent=77 // loop_footer_branch
                  %1886 = sbr.rel target = $region87
                $region92: #{minigrid_mlp_target_embedding_forward.1} parent=77 // loop_exit
                  _
              $region78: #{minigrid_mlp_target_embedding_forward.1} parent=55 // pred_fallthru
                _
            $region56: #{minigrid_mlp_target_embedding_forward.1} parent=51 // pred_fallthru
              _
            // Predicated region
            $region57: #{minigrid_mlp_target_embedding_forward.1} parent=51 // pred_check
              _
            $region58: #{minigrid_mlp_target_embedding_forward.1} parent=51 // pred_check_branch
              %1687 = sbr.rel (0) target = $region60
            $region59: #{minigrid_mlp_target_embedding_forward.1} parent=51 // pred_region
              %s1689 = sshrl.u32 %s1676, 5
              // While loop
              $region61: #{minigrid_mlp_target_embedding_forward.1} parent=59 // loop_pre_header
                _
              $region62: #{minigrid_mlp_target_embedding_forward.1} parent=59 // loop_header
                %s1691 = sphi 0, %s1693
                %p1692 = scmp.ge.s32.totalorder %s1691, %s1689
                %s1696 = sphi 0, %s1765
                %s1697 = sphi %s1669, %s1768
                %s1698 = sphi %s1680, %s1769
              $region63: #{minigrid_mlp_target_embedding_forward.1} parent=59 // loop_header_branch
                %1695 = sbr.rel (%p1692) target = $region67
              $region64: #{minigrid_mlp_target_embedding_forward.1} parent=59 // loop_body
                %v1699 = vld [vmem:[%s1697] sm:$0xf]
                %1700 = vst [vmem:[%s1698] sm:$0xf] %v1699
                %v1701 = vld [vmem:[%s1697 + $0x4] sm:$0xf]
                %1702 = vst [vmem:[%s1698 + $0x4] sm:$0xf] %v1701
                %v1703 = vld [vmem:[%s1697 + $0x8] sm:$0xf]
                %1704 = vst [vmem:[%s1698 + $0x8] sm:$0xf] %v1703
                %v1705 = vld [vmem:[%s1697 + $0xc] sm:$0xf]
                %1706 = vst [vmem:[%s1698 + $0xc] sm:$0xf] %v1705
                %v1707 = vld [vmem:[%s1697 + $0x10] sm:$0xf]
                %1708 = vst [vmem:[%s1698 + $0x10] sm:$0xf] %v1707
                %v1709 = vld [vmem:[%s1697 + $0x14] sm:$0xf]
                %1710 = vst [vmem:[%s1698 + $0x14] sm:$0xf] %v1709
                %v1711 = vld [vmem:[%s1697 + $0x18] sm:$0xf]
                %1712 = vst [vmem:[%s1698 + $0x18] sm:$0xf] %v1711
                %v1713 = vld [vmem:[%s1697 + $0x1c] sm:$0xf]
                %1714 = vst [vmem:[%s1698 + $0x1c] sm:$0xf] %v1713
                %v1715 = vld [vmem:[%s1697 + $0x20] sm:$0xf]
                %1716 = vst [vmem:[%s1698 + $0x20] sm:$0xf] %v1715
                %v1717 = vld [vmem:[%s1697 + $0x24] sm:$0xf]
                %1718 = vst [vmem:[%s1698 + $0x24] sm:$0xf] %v1717
                %v1719 = vld [vmem:[%s1697 + $0x28] sm:$0xf]
                %1720 = vst [vmem:[%s1698 + $0x28] sm:$0xf] %v1719
                %v1721 = vld [vmem:[%s1697 + $0x2c] sm:$0xf]
                %1722 = vst [vmem:[%s1698 + $0x2c] sm:$0xf] %v1721
                %v1723 = vld [vmem:[%s1697 + $0x30] sm:$0xf]
                %1724 = vst [vmem:[%s1698 + $0x30] sm:$0xf] %v1723
                %v1725 = vld [vmem:[%s1697 + $0x34] sm:$0xf]
                %1726 = vst [vmem:[%s1698 + $0x34] sm:$0xf] %v1725
                %v1727 = vld [vmem:[%s1697 + $0x38] sm:$0xf]
                %1728 = vst [vmem:[%s1698 + $0x38] sm:$0xf] %v1727
                %v1729 = vld [vmem:[%s1697 + $0x3c] sm:$0xf]
                %1730 = vst [vmem:[%s1698 + $0x3c] sm:$0xf] %v1729
                %v1731 = vld [vmem:[%s1697 + $0x40] sm:$0xf]
                %1732 = vst [vmem:[%s1698 + $0x40] sm:$0xf] %v1731
                %v1733 = vld [vmem:[%s1697 + $0x44] sm:$0xf]
                %1734 = vst [vmem:[%s1698 + $0x44] sm:$0xf] %v1733
                %v1735 = vld [vmem:[%s1697 + $0x48] sm:$0xf]
                %1736 = vst [vmem:[%s1698 + $0x48] sm:$0xf] %v1735
                %v1737 = vld [vmem:[%s1697 + $0x4c] sm:$0xf]
                %1738 = vst [vmem:[%s1698 + $0x4c] sm:$0xf] %v1737
                %v1739 = vld [vmem:[%s1697 + $0x50] sm:$0xf]
                %1740 = vst [vmem:[%s1698 + $0x50] sm:$0xf] %v1739
                %v1741 = vld [vmem:[%s1697 + $0x54] sm:$0xf]
                %1742 = vst [vmem:[%s1698 + $0x54] sm:$0xf] %v1741
                %v1743 = vld [vmem:[%s1697 + $0x58] sm:$0xf]
                %1744 = vst [vmem:[%s1698 + $0x58] sm:$0xf] %v1743
                %v1745 = vld [vmem:[%s1697 + $0x5c] sm:$0xf]
                %1746 = vst [vmem:[%s1698 + $0x5c] sm:$0xf] %v1745
                %v1747 = vld [vmem:[%s1697 + $0x60] sm:$0xf]
                %1748 = vst [vmem:[%s1698 + $0x60] sm:$0xf] %v1747
                %v1749 = vld [vmem:[%s1697 + $0x64] sm:$0xf]
                %1750 = vst [vmem:[%s1698 + $0x64] sm:$0xf] %v1749
                %v1751 = vld [vmem:[%s1697 + $0x68] sm:$0xf]
                %1752 = vst [vmem:[%s1698 + $0x68] sm:$0xf] %v1751
                %v1753 = vld [vmem:[%s1697 + $0x6c] sm:$0xf]
                %1754 = vst [vmem:[%s1698 + $0x6c] sm:$0xf] %v1753
                %v1755 = vld [vmem:[%s1697 + $0x70] sm:$0xf]
                %1756 = vst [vmem:[%s1698 + $0x70] sm:$0xf] %v1755
                %v1757 = vld [vmem:[%s1697 + $0x74] sm:$0xf]
                %1758 = vst [vmem:[%s1698 + $0x74] sm:$0xf] %v1757
                %v1759 = vld [vmem:[%s1697 + $0x78] sm:$0xf]
                %1760 = vst [vmem:[%s1698 + $0x78] sm:$0xf] %v1759
                %v1761 = vld [vmem:[%s1697 + $0x7c] sm:$0xf]
                %1762 = vst [vmem:[%s1698 + $0x7c] sm:$0xf] %v1761
                %s1763 = sadd.s32 1, %s1696
                %p1764 = scmp.ge.s32.totalorder %s1763, %s1689
                %s1765 = scalar_select %p1764, 0, %s1763
                %s1766 = smul.u32 %s1765, 128
                %s1767 = smul.u32 %s1765, 128
                %s1768 = scalar_lea.vmem %s1669, %s1766 [#allocation2]
                %s1769 = scalar_lea.vmem %s1680, %s1767
              $region65: #{minigrid_mlp_target_embedding_forward.1} parent=59 // loop_footer
                %s1693 = sadd.s32 %s1691, 1
              $region66: #{minigrid_mlp_target_embedding_forward.1} parent=59 // loop_footer_branch
                %1690 = sbr.rel target = $region62
              $region67: #{minigrid_mlp_target_embedding_forward.1} parent=59 // loop_exit
                _
              %s1770 = sshrl.u32 %s1676, 5
              %s1771 = sand.u32 %s1676, 31
              %s1772 = smul.u32 %s1770, 32
              %s1773 = smul.u32 4, %s1772
              %s1774 = scalar_lea.vmem %s1669, %s1773 [#allocation2]
              %s1775 = smul.u32 4, %s1772
              %s1776 = scalar_lea.vmem %s1680, %s1775
              // While loop
              $region68: #{minigrid_mlp_target_embedding_forward.1} parent=59 // loop_pre_header
                _
              $region69: #{minigrid_mlp_target_embedding_forward.1} parent=59 // loop_header
                %s1778 = sphi 0, %s1780
                %p1779 = scmp.ge.s32.totalorder %s1778, %s1771
                %s1783 = sphi 0, %s1790
                %s1784 = sphi %s1774, %s1793
                %s1785 = sphi %s1776, %s1794
              $region70: #{minigrid_mlp_target_embedding_forward.1} parent=59 // loop_header_branch
                %1782 = sbr.rel (%p1779) target = $region74
              $region71: #{minigrid_mlp_target_embedding_forward.1} parent=59 // loop_body
                %v1786 = vld [vmem:[%s1784] sm:$0xf]
                %1787 = vst [vmem:[%s1785] sm:$0xf] %v1786
                %s1788 = sadd.s32 1, %s1783
                %p1789 = scmp.ge.s32.totalorder %s1788, %s1771
                %s1790 = scalar_select %p1789, 0, %s1788
                %s1791 = smul.u32 %s1790, 4
                %s1792 = smul.u32 %s1790, 4
                %s1793 = scalar_lea.vmem %s1774, %s1791 [#allocation2]
                %s1794 = scalar_lea.vmem %s1776, %s1792
              $region72: #{minigrid_mlp_target_embedding_forward.1} parent=59 // loop_footer
                %s1780 = sadd.s32 %s1778, 1
              $region73: #{minigrid_mlp_target_embedding_forward.1} parent=59 // loop_footer_branch
                %1777 = sbr.rel target = $region69
              $region74: #{minigrid_mlp_target_embedding_forward.1} parent=59 // loop_exit
                _
            $region60: #{minigrid_mlp_target_embedding_forward.1} parent=51 // pred_fallthru
              _
          $region52: #{minigrid_mlp_target_embedding_forward.1} parent=47 // pred_fallthru
            _
          %1904 = vnop
        $region48: #{minigrid_mlp_target_embedding_forward.1} parent=43 // pred_fallthru
          _
      $region44: #{minigrid_mlp_target_embedding_forward.1} parent=5 // pred_fallthru
        _
      %p1905 = scmp.le.s32.totalorder 2, %s12
      // Predicated region
      $region93: #{minigrid_mlp_target_embedding_forward.1} parent=5 // pred_check
        %p1906 = pneg %p1905
      $region94: #{minigrid_mlp_target_embedding_forward.1} parent=5 // pred_check_branch
        %1908 = sbr.rel (%p1906) target = $region96
      $region95: #{minigrid_mlp_target_embedding_forward.1} parent=5 // pred_region
        %s1909 = ssub.s32 %s12, 2
        // Predicated region
        $region97: #{minigrid_mlp_target_embedding_forward.1} parent=95 // pred_check
          %p1910 = pneg %p172
        $region98: #{minigrid_mlp_target_embedding_forward.1} parent=95 // pred_check_branch
          %1912 = sbr.rel (%p1910) target = $region100
        $region99: #{minigrid_mlp_target_embedding_forward.1} parent=95 // pred_region
          %s1913 = sand.u32 %s157, 1
          %s1914 = sand.u32 %s157, 1
          %s1915 = smul.addr %s1914, 128
          %s1916 = scalar_lea.vmem [#allocation2], %s1915
        $region100: #{minigrid_mlp_target_embedding_forward.1} parent=95 // pred_fallthru
          _
      $region96: #{minigrid_mlp_target_embedding_forward.1} parent=5 // pred_fallthru
        _
    $region6: #{minigrid_mlp_target_embedding_forward.1} parent=1 // loop_footer
      %s16 = sadd.s32 1, %s12
    $region7: #{minigrid_mlp_target_embedding_forward.1} parent=1 // loop_footer_branch
      %11 = sbr.rel target = $region3
    $region8: #{minigrid_mlp_target_embedding_forward.1} parent=1 // loop_exit
      _

</llo_original>
